<compile_context>
chip_gen: v7x
topology: tpu7x:2x2x1
jax: 0.10.0
libtpu: 0.0.40
codegen_flags: <defaults>
</compile_context>

<pallas_src>
import jax
import jax.numpy as jnp
from jax.experimental import pallas as pl
from jax.experimental.pallas import tpu as pltpu


def _round_up(x: int, m: int) -> int:
    return ((x + m - 1) // m) * m


_VMEM_BUDGET = 40 * 1024 * 1024        # tile-selection budget (fits v5e/v6e/v7x)
_VMEM_LIMIT_CAP = 48 * 1024 * 1024     # stay under v7x's 64 MiB physical VMEM


def _vmem_bytes(tm, tk, e2_pad, f_pad, we_bufs, res_bufs):
    """Rough VMEM footprint of one grid step (bytes)."""
    b = 2 * tm * tk * 2                          # x tile (bf16, double-buffered)
    b += we_bufs * tk * e2_pad * 2               # streamed encoder-weight tile (bf16)
    b += res_bufs * (e2_pad * 4                  # be
                     + e2_pad * f_pad * 2        # w1 (bf16)
                     + f_pad * 4                 # b1
                     + f_pad * f_pad * 2         # w2 (bf16)
                     + f_pad * 4)                # b2
    b += 2 * tm * f_pad * 4                      # output tile (f32, double-buffered)
    b += tm * e2_pad * 4                         # f32 accumulator scratch
    return b


def _pick_k_tile(k_pad, tm, e2_pad, f_pad):
    # k_pad is always a multiple of 128, so 128 always divides it.
    for t in (2048, 1024, 512, 384, 256, 128):
        if k_pad % t == 0 and _vmem_bytes(tm, t, e2_pad, f_pad, 2, 2) <= _VMEM_BUDGET:
            return t
    return 128


def encode_project_kernel(x_ref, we_ref, be_ref, w1_ref, b1_ref, w2_ref, b2_ref,
                          feat_ref, acc_ref):
    """K-tiled encode (stand-in DCAL get_features) + feature projection + L2 norm.

    Grid: (M tiles [parallel], K tiles [arbitrary/reduction]).  Partial encoder
    products accumulate in a per-M-tile f32 VMEM scratch; the small projection
    head runs once on the final K step.
    """
    k = pl.program_id(1)

    @pl.when(k == 0)
    def _():
        acc_ref[...] = jnp.zeros_like(acc_ref)

    # bf16 x bf16 -> f32 accumulation on the MXU.
    acc_ref[...] += jnp.dot(x_ref[...], we_ref[...],
                            preferred_element_type=jnp.float32)

    @pl.when(k == pl.num_programs(1) - 1)
    def _():
        # Stand-in encoder output: [tm, 2*embed_dim] (padded to lane width).
        f = acc_ref[...] + be_ref[...]

        # feature_projection: Linear -> ReLU -> Dropout(eval: identity) -> Linear
        h = jnp.dot(f.astype(jnp.bfloat16), w1_ref[...],
                    preferred_element_type=jnp.float32) + b1_ref[...]
        h = jnp.maximum(h, 0.0)
        p = jnp.dot(h.astype(jnp.bfloat16), w2_ref[...],
                    preferred_element_type=jnp.float32) + b2_ref[...]

        # F.normalize(p=2, dim=1, eps=1e-12): x / max(||x||, 1e-12).
        # Padded feature columns are exactly zero (zero-padded weights/biases),
        # so the norm over the padded width equals the true norm.
        nrm_sq = jnp.sum(p * p, axis=1, keepdims=True)
        inv = jax.lax.rsqrt(jnp.maximum(nrm_sq, 1e-24))   # == 1/max(||x||, 1e-12)
        feat_ref[...] = p * inv


def _spec(shape, index_map, mode=None):
    if mode is None:
        return pl.BlockSpec(shape, index_map)
    return pl.BlockSpec(shape, index_map, pipeline_mode=mode)


def _run_encoder_head(x_p, params, tm, tk, M_pad, K_pad, E2_pad, F_pad,
                      vmem_limit, cost, single_buffer_residents, we_buffers):
    resident_mode = pl.Buffered(1) if single_buffer_residents else None
    we_mode = pl.Buffered(we_buffers) if we_buffers is not None else None

    in_specs = [
        _spec((tm, tk), lambda m, k: (m, k)),                     # x: M/K-tiled
        _spec((tk, E2_pad), lambda m, k: (k, 0), we_mode),        # we: K-tiled stream
        _spec((1, E2_pad), lambda m, k: (0, 0), resident_mode),   # be (resident)
        _spec((E2_pad, F_pad), lambda m, k: (0, 0), resident_mode),  # w1 (resident)
        _spec((1, F_pad), lambda m, k: (0, 0), resident_mode),    # b1
        _spec((F_pad, F_pad), lambda m, k: (0, 0), resident_mode),   # w2 (resident)
        _spec((1, F_pad), lambda m, k: (0, 0), resident_mode),    # b2
    ]
    out_specs = pl.BlockSpec((tm, F_pad), lambda m, k: (m, 0))

    call = pl.pallas_call(
        encode_project_kernel,
        out_shape=jax.ShapeDtypeStruct((M_pad, F_pad), jnp.float32),
        grid_spec=pltpu.PrefetchScalarGridSpec(
            num_scalar_prefetch=0,
            grid=(M_pad // tm, K_pad // tk),
            in_specs=in_specs,
            out_specs=out_specs,
            scratch_shapes=[pltpu.VMEM((tm, E2_pad), jnp.float32)],
        ),
        compiler_params=pltpu.CompilerParams(
            dimension_semantics=("parallel", "arbitrary"),   # M parallel, K reduction
            vmem_limit_bytes=vmem_limit),
        cost_estimate=cost,
    )
    return call(x_p, params["we"], params["be"], params["w1"], params["b1"],
                params["w2"], params["b2"])


def siamese_dcal_forward(img1, img2, params):
    B = img1.shape[0]
    feature_dim = params["feature_dim"]

    # Stack the two siamese branches -> one pass over the shared weights.
    # Cast to bf16 BEFORE concat/pad so the wrapper never materializes a padded
    # f32 copy of x (the kernel consumes bf16 anyway).
    x1 = img1.reshape(B, -1).astype(jnp.bfloat16)
    x2 = img2.reshape(B, -1).astype(jnp.bfloat16)
    x = jnp.concatenate([x1, x2], axis=0)                   # [2B, K] bf16
    M, K = x.shape

    we = params["we"]
    K_pad, E2_pad = we.shape
    F_pad = params["w2"].shape[1]

    tm = min(_round_up(M, 16), 256)          # 16 = bf16 sublane pack width
    M_pad = _round_up(M, tm)
    tk = _pick_k_tile(K_pad, tm, E2_pad, F_pad)

    if M_pad != M or K_pad != K:
        x = jnp.pad(x, ((0, M_pad - M), (0, K_pad - K)))

    # Third buffer on the streamed weight only when the K tile had to stay small.
    we_buffers = 3 if (tk <= 256 and
                       _vmem_bytes(tm, tk, E2_pad, F_pad, 3, 2) <= _VMEM_BUDGET) else None

    est = _vmem_bytes(tm, tk, E2_pad, F_pad, 3 if we_buffers else 2, 2)
    vmem_limit = int(min(max(est * 5 // 4, 16 * 1024 * 1024), _VMEM_LIMIT_CAP))

    n_m = M_pad // tm
    flops = (2 * M_pad * K_pad * E2_pad
             + 2 * M_pad * E2_pad * F_pad
             + 2 * M_pad * F_pad * F_pad)
    bytes_accessed = (M_pad * K_pad * 2
                      + n_m * K_pad * E2_pad * 2
                      + E2_pad * F_pad * 2 + F_pad * F_pad * 2
                      + (E2_pad + 2 * F_pad) * 4
                      + M_pad * F_pad * 4)
    cost = pl.CostEstimate(flops=flops, transcendentals=M_pad,
                           bytes_accessed=bytes_accessed)

    try:
        feats_p = _run_encoder_head(x, params, tm, tk, M_pad, K_pad, E2_pad, F_pad,
                                    vmem_limit, cost,
                                    single_buffer_residents=True,
                                    we_buffers=we_buffers)
    except Exception:
        # Fallback for jax versions without BlockSpec(pipeline_mode=...).
        feats_p = _run_encoder_head(x, params, tm, tk, M_pad, K_pad, E2_pad, F_pad,
                                    vmem_limit, cost,
                                    single_buffer_residents=False,
                                    we_buffers=None)

    feats = feats_p[:M, :feature_dim]
    f1, f2 = feats[:B], feats[B:]

    # Tail is O(B) flops -> plain JAX (avoids lane-sparse (B,1)/(B,2) kernel outputs).
    # F.cosine_similarity: features are already unit-norm, so the eps denominator
    # clamp is a no-op and cos == <f1, f2>.
    cos = jnp.sum(f1 * f2, axis=1)
    sim = cos * (1.0 / params["temp"])                       # temperature scaling
    logits = sim[:, None] * params["wc"][None, :] + params["bc"][None, :]  # Linear(1,2)

    return {
        "similarity": sim,       # [B]
        "logits": logits,        # [B, 2]
        "features1": f1,         # [B, feature_dim]
        "features2": f2,         # [B, feature_dim]
    }


def init_params(key, in_dim, embed_dim, feature_dim, temperature=0.07):
    """Deterministic synthetic parameters, pre-padded to lane width and stored
    in bf16 (weights) / f32 (biases) to halve HBM weight traffic."""
    ks = jax.random.split(key, 4)
    two_e = 2 * embed_dim

    def lin(k, fan_in, fan_out):
        bound = 1.0 / (fan_in ** 0.5)
        kw, kb = jax.random.split(k)
        w = jax.random.uniform(kw, (fan_in, fan_out), jnp.float32, -bound, bound)
        b = jax.random.uniform(kb, (fan_out,), jnp.float32, -bound, bound)
        return w, b

    we, be = lin(ks[0], in_dim, two_e)            # stand-in DCAL encoder
    w1, b1 = lin(ks[1], two_e, feature_dim)       # feature_projection[0]
    w2, b2 = lin(ks[2], feature_dim, feature_dim) # feature_projection[3]
    wc, bc = lin(ks[3], 1, 2)                     # classifier Linear(1, 2)

    k_pad = _round_up(in_dim, 128)
    e2_pad = _round_up(two_e, 128)
    f_pad = _round_up(feature_dim, 128)

    def pad2(a, r, c):
        return jnp.pad(a, ((0, r - a.shape[0]), (0, c - a.shape[1])))

    def pad_row(a, c):
        return jnp.pad(a, (0, c - a.shape[0])).reshape(1, c)

    return dict(
        we=pad2(we, k_pad, e2_pad).astype(jnp.bfloat16),
        be=pad_row(be, e2_pad),
        w1=pad2(w1, e2_pad, f_pad).astype(jnp.bfloat16),
        b1=pad_row(b1, f_pad),
        w2=pad2(w2, f_pad, f_pad).astype(jnp.bfloat16),
        b2=pad_row(b2, f_pad),
        wc=wc[0],                                  # (2,)
        bc=bc,                                     # (2,)
        temp=jnp.float32(temperature),
        feature_dim=feature_dim,
    )


def _reference_forward(img1, img2, params):
    """Plain-JAX reference following the same bf16-matmul / f32-accumulate path."""
    B = img1.shape[0]
    fd = params["feature_dim"]
    x = jnp.concatenate([img1.reshape(B, -1), img2.reshape(B, -1)], axis=0)
    K = x.shape[1]
    x_bf = x.astype(jnp.bfloat16)

    f = jnp.dot(x_bf, params["we"][:K], preferred_element_type=jnp.float32) + params["be"]
    h = jnp.maximum(jnp.dot(f.astype(jnp.bfloat16), params["w1"],
                            preferred_element_type=jnp.float32) + params["b1"], 0.0)
    p = jnp.dot(h.astype(jnp.bfloat16), params["w2"],
                preferred_element_type=jnp.float32) + params["b2"]
    p = p[:, :fd]
    nrm = jnp.sqrt(jnp.sum(p * p, axis=1, keepdims=True))
    feats = p / jnp.maximum(nrm, 1e-12)
    f1, f2 = feats[:B], feats[B:]
    cos = jnp.sum(f1 * f2, axis=1)
    sim = cos / params["temp"]
    logits = sim[:, None] * params["wc"][None, :] + params["bc"][None, :]
    return {"similarity": sim, "logits": logits, "features1": f1, "features2": f2}


if __name__ == "__main__":
    B, C, H, W = 2, 3, 16, 16
    embed_dim, feature_dim = 32, 64

    key = jax.random.PRNGKey(0)
    k1, k2 = jax.random.split(key)
    img1 = jax.random.normal(k1, (B, C, H, W), jnp.float32)
    img2 = jax.random.normal(k2, (B, C, H, W), jnp.float32)

    params = init_params(jax.random.PRNGKey(42), C * H * W, embed_dim, feature_dim)

    out = siamese_dcal_forward(img1, img2, params)
    jax.block_until_ready(out)

    assert out["similarity"].shape == (B,)
    assert out["logits"].shape == (B, 2)
    assert out["features1"].shape == (B, feature_dim)
    assert out["features2"].shape == (B, feature_dim)
    # normalized features must have unit L2 norm
    assert jnp.allclose(jnp.linalg.norm(out["features1"], axis=1), 1.0, atol=1e-4)
    assert jnp.allclose(jnp.linalg.norm(out["features2"], axis=1), 1.0, atol=1e-4)

    # numerical check against a plain-JAX reference using the same bf16 path
    ref = _reference_forward(img1, img2, params)
    assert jnp.allclose(out["features1"], ref["features1"], atol=5e-3, rtol=5e-3)
    assert jnp.allclose(out["features2"], ref["features2"], atol=5e-3, rtol=5e-3)
    assert jnp.allclose(out["similarity"], ref["similarity"], atol=5e-2, rtol=5e-3)
    assert jnp.allclose(out["logits"], ref["logits"], atol=5e-2, rtol=5e-3)

    print("KERNEL_OK")
</pallas_src>

<mosaic_0001>
module attributes {stable_mosaic.version = 11 : i64} {
  func.func @encode_project_kernel(%arg0: i32, %arg1: i32, %arg2: memref<16x384xbf16, #tpu.memory_space<vmem>>, %arg3: memref<384x128xbf16, #tpu.memory_space<vmem>>, %arg4: memref<1x128xf32, #tpu.memory_space<vmem>>, %arg5: memref<128x128xbf16, #tpu.memory_space<vmem>>, %arg6: memref<1x128xf32, #tpu.memory_space<vmem>>, %arg7: memref<128x128xbf16, #tpu.memory_space<vmem>>, %arg8: memref<1x128xf32, #tpu.memory_space<vmem>>, %arg9: memref<16x128xf32, #tpu.memory_space<vmem>>, %arg10: memref<16x128xf32, #tpu.memory_space<vmem>>) attributes {dimension_semantics = [#tpu.dimension_semantics<parallel>, #tpu.dimension_semantics<arbitrary>], iteration_bounds = array<i64: 1, 2>, scalar_prefetch = 0 : i64, scratch_operands = 1 : i64, tpu.core_type = #tpu.core_type<tc>, window_params = [{transform_indices = @transform_0, window_bounds = array<i64: 16, 384>}, {transform_indices = @transform_1, window_bounds = array<i64: 384, 128>}, {pipeline_mode = #tpu.pipeline_mode<synchronous>, transform_indices = @transform_2, window_bounds = array<i64: 1, 128>}, {pipeline_mode = #tpu.pipeline_mode<synchronous>, transform_indices = @transform_3, window_bounds = array<i64: 128, 128>}, {pipeline_mode = #tpu.pipeline_mode<synchronous>, transform_indices = @transform_4, window_bounds = array<i64: 1, 128>}, {pipeline_mode = #tpu.pipeline_mode<synchronous>, transform_indices = @transform_5, window_bounds = array<i64: 128, 128>}, {pipeline_mode = #tpu.pipeline_mode<synchronous>, transform_indices = @transform_6, window_bounds = array<i64: 1, 128>}, {transform_indices = @transform_7, window_bounds = array<i64: 16, 128>}]} {
    %c0_i32 = arith.constant 0 : i32
    %0 = arith.cmpi eq, %arg1, %c0_i32 : i32
    %1 = arith.extui %0 : i1 to i32
    %c0_i32_0 = arith.constant 0 : i32
    %2 = arith.cmpi ne, %1, %c0_i32_0 : i32
    scf.if %2 {
      %cst_9 = arith.constant 0.000000e+00 : f32
      %12 = vector.broadcast %cst_9 : f32 to vector<16x128xf32>
      %c0_10 = arith.constant 0 : index
      %c0_11 = arith.constant 0 : index
      %13 = vector.load %arg10[%c0_10, %c0_11] : memref<16x128xf32, #tpu.memory_space<vmem>>, vector<16x128xf32>
      tpu.vector_store %arg10[%c0_10, %c0_11], %12 {strides = array<i32>} : memref<16x128xf32, #tpu.memory_space<vmem>>, vector<16x128xf32>,
    } else {
    }
    %c0 = arith.constant 0 : index
    %c0_1 = arith.constant 0 : index
    %3 = vector.load %arg10[%c0, %c0_1] : memref<16x128xf32, #tpu.memory_space<vmem>>, vector<16x128xf32>
    %c0_2 = arith.constant 0 : index
    %c0_3 = arith.constant 0 : index
    %4 = vector.load %arg2[%c0_2, %c0_3] : memref<16x384xbf16, #tpu.memory_space<vmem>>, vector<16x384xbf16>
    %c0_4 = arith.constant 0 : index
    %c0_5 = arith.constant 0 : index
    %5 = vector.load %arg3[%c0_4, %c0_5] : memref<384x128xbf16, #tpu.memory_space<vmem>>, vector<384x128xbf16>
    %cst = arith.constant dense<0.000000e+00> : vector<16x128xf32>
    %6 = tpu.matmul %4, %5, %cst {dimension_numbers = #tpu.dot_dimension_numbers<[1], [0], [0], [1], [0, 0, 1, 1], [], []>} : vector<16x384xbf16>, vector<384x128xbf16>, vector<16x128xf32> -> vector<16x128xf32>
    %7 = arith.addf %3, %6 : vector<16x128xf32>
    %c0_6 = arith.constant 0 : index
    %c0_7 = arith.constant 0 : index
    %8 = vector.load %arg10[%c0_6, %c0_7] : memref<16x128xf32, #tpu.memory_space<vmem>>, vector<16x128xf32>
    tpu.vector_store %arg10[%c0_6, %c0_7], %7 {strides = array<i32>} : memref<16x128xf32, #tpu.memory_space<vmem>>, vector<16x128xf32>,
    %c1_i32 = arith.constant 1 : i32
    %9 = arith.cmpi eq, %arg1, %c1_i32 : i32
    %10 = arith.extui %9 : i1 to i32
    %c0_i32_8 = arith.constant 0 : i32
    %11 = arith.cmpi ne, %10, %c0_i32_8 : i32
    scf.if %11 {
      %c0_9 = arith.constant 0 : index
      %c0_10 = arith.constant 0 : index
      %12 = vector.load %arg10[%c0_9, %c0_10] : memref<16x128xf32, #tpu.memory_space<vmem>>, vector<16x128xf32>
      %c0_11 = arith.constant 0 : index
      %c0_12 = arith.constant 0 : index
      %13 = vector.load %arg4[%c0_11, %c0_12] : memref<1x128xf32, #tpu.memory_space<vmem>>, vector<1x128xf32>
      %14 = vector.broadcast %13 : vector<1x128xf32> to vector<16x128xf32>
      %15 = arith.addf %12, %14 : vector<16x128xf32>
      %16 = arith.truncf %15 : vector<16x128xf32> to vector<16x128xbf16>
      %c0_13 = arith.constant 0 : index
      %c0_14 = arith.constant 0 : index
      %17 = vector.load %arg5[%c0_13, %c0_14] : memref<128x128xbf16, #tpu.memory_space<vmem>>, vector<128x128xbf16>
      %cst_15 = arith.constant dense<0.000000e+00> : vector<16x128xf32>
      %18 = tpu.matmul %16, %17, %cst_15 {dimension_numbers = #tpu.dot_dimension_numbers<[1], [0], [0], [1], [0, 0, 1, 1], [], []>} : vector<16x128xbf16>, vector<128x128xbf16>, vector<16x128xf32> -> vector<16x128xf32>
      %c0_16 = arith.constant 0 : index
      %c0_17 = arith.constant 0 : index
      %19 = vector.load %arg6[%c0_16, %c0_17] : memref<1x128xf32, #tpu.memory_space<vmem>>, vector<1x128xf32>
      %20 = vector.broadcast %19 : vector<1x128xf32> to vector<16x128xf32>
      %21 = arith.addf %18, %20 : vector<16x128xf32>
      %cst_18 = arith.constant 0.000000e+00 : f32
      %22 = vector.broadcast %cst_18 : f32 to vector<16x128xf32>
      %23 = arith.maximumf %21, %22 : vector<16x128xf32>
      %24 = arith.truncf %23 : vector<16x128xf32> to vector<16x128xbf16>
      %c0_19 = arith.constant 0 : index
      %c0_20 = arith.constant 0 : index
      %25 = vector.load %arg7[%c0_19, %c0_20] : memref<128x128xbf16, #tpu.memory_space<vmem>>, vector<128x128xbf16>
      %cst_21 = arith.constant dense<0.000000e+00> : vector<16x128xf32>
      %26 = tpu.matmul %24, %25, %cst_21 {dimension_numbers = #tpu.dot_dimension_numbers<[1], [0], [0], [1], [0, 0, 1, 1], [], []>} : vector<16x128xbf16>, vector<128x128xbf16>, vector<16x128xf32> -> vector<16x128xf32>
      %c0_22 = arith.constant 0 : index
      %c0_23 = arith.constant 0 : index
      %27 = vector.load %arg8[%c0_22, %c0_23] : memref<1x128xf32, #tpu.memory_space<vmem>>, vector<1x128xf32>
      %28 = vector.broadcast %27 : vector<1x128xf32> to vector<16x128xf32>
      %29 = arith.addf %26, %28 : vector<16x128xf32>
      %30 = arith.mulf %29, %29 : vector<16x128xf32>
      %cst_24 = arith.constant dense<0.000000e+00> : vector<16xf32>
      %31 = vector.multi_reduction <add>, %30, %cst_24 [1] : vector<16x128xf32> to vector<16xf32>
      %32 = vector.shape_cast %31 : vector<16xf32> to vector<16x1xf32>
      %cst_25 = arith.constant 1.000000e-24 : f32
      %33 = vector.broadcast %cst_25 : f32 to vector<16x1xf32>
      %34 = arith.maximumf %32, %33 : vector<16x1xf32>
      %35 = math.rsqrt %34 : vector<16x1xf32>
      %36 = vector.broadcast %35 : vector<16x1xf32> to vector<16x128xf32>
      %37 = arith.mulf %29, %36 : vector<16x128xf32>
      %c0_26 = arith.constant 0 : index
      %c0_27 = arith.constant 0 : index
      %38 = vector.load %arg9[%c0_26, %c0_27] : memref<16x128xf32, #tpu.memory_space<vmem>>, vector<16x128xf32>
      tpu.vector_store %arg9[%c0_26, %c0_27], %37 {strides = array<i32>} : memref<16x128xf32, #tpu.memory_space<vmem>>, vector<16x128xf32>,
    } else {
    }
    return
  }
  func.func @transform_0(%arg0: i32, %arg1: i32) -> (i32, i32) {
    %c0_i32 = arith.constant 0 : i32
    return %arg0, %arg1 : i32, i32
  }
  func.func @transform_1(%arg0: i32, %arg1: i32) -> (i32, i32) {
    %c0_i32 = arith.constant 0 : i32
    %c0_i32_0 = arith.constant 0 : i32
    return %arg1, %c0_i32 : i32, i32
  }
  func.func @transform_2(%arg0: i32, %arg1: i32) -> (i32, i32) {
    %c0_i32 = arith.constant 0 : i32
    %c0_i32_0 = arith.constant 0 : i32
    %c0_i32_1 = arith.constant 0 : i32
    return %c0_i32, %c0_i32_0 : i32, i32
  }
  func.func @transform_3(%arg0: i32, %arg1: i32) -> (i32, i32) {
    %c0_i32 = arith.constant 0 : i32
    %c0_i32_0 = arith.constant 0 : i32
    %c0_i32_1 = arith.constant 0 : i32
    return %c0_i32, %c0_i32_0 : i32, i32
  }
  func.func @transform_4(%arg0: i32, %arg1: i32) -> (i32, i32) {
    %c0_i32 = arith.constant 0 : i32
    %c0_i32_0 = arith.constant 0 : i32
    %c0_i32_1 = arith.constant 0 : i32
    return %c0_i32, %c0_i32_0 : i32, i32
  }
  func.func @transform_5(%arg0: i32, %arg1: i32) -> (i32, i32) {
    %c0_i32 = arith.constant 0 : i32
    %c0_i32_0 = arith.constant 0 : i32
    %c0_i32_1 = arith.constant 0 : i32
    return %c0_i32, %c0_i32_0 : i32, i32
  }
  func.func @transform_6(%arg0: i32, %arg1: i32) -> (i32, i32) {
    %c0_i32 = arith.constant 0 : i32
    %c0_i32_0 = arith.constant 0 : i32
    %c0_i32_1 = arith.constant 0 : i32
    return %c0_i32, %c0_i32_0 : i32, i32
  }
  func.func @transform_7(%arg0: i32, %arg1: i32) -> (i32, i32) {
    %c0_i32 = arith.constant 0 : i32
    %c0_i32_0 = arith.constant 0 : i32
    return %arg0, %c0_i32 : i32, i32
  }
}

module attributes {stable_mosaic.version = 11 : i64} {
  func.func @encode_project_kernel(%arg0: i32, %arg1: i32, %arg2: memref<16x384xbf16, #tpu.memory_space<vmem>>, %arg3: memref<384x128xbf16, #tpu.memory_space<vmem>>, %arg4: memref<1x128xf32, #tpu.memory_space<vmem>>, %arg5: memref<128x128xbf16, #tpu.memory_space<vmem>>, %arg6: memref<1x128xf32, #tpu.memory_space<vmem>>, %arg7: memref<128x128xbf16, #tpu.memory_space<vmem>>, %arg8: memref<1x128xf32, #tpu.memory_space<vmem>>, %arg9: memref<16x128xf32, #tpu.memory_space<vmem>>, %arg10: memref<16x128xf32, #tpu.memory_space<vmem>>) attributes {dimension_semantics = [#tpu.dimension_semantics<parallel>, #tpu.dimension_semantics<arbitrary>], iteration_bounds = array<i64: 1, 2>, scalar_prefetch = 0 : i64, scratch_operands = 1 : i64, tpu.core_type = #tpu.core_type<tc>, window_params = [{transform_indices = @transform_0, window_bounds = array<i64: 16, 384>}, {transform_indices = @transform_1, window_bounds = array<i64: 384, 128>}, {pipeline_mode = #tpu.pipeline_mode<synchronous>, transform_indices = @transform_2, window_bounds = array<i64: 1, 128>}, {pipeline_mode = #tpu.pipeline_mode<synchronous>, transform_indices = @transform_3, window_bounds = array<i64: 128, 128>}, {pipeline_mode = #tpu.pipeline_mode<synchronous>, transform_indices = @transform_4, window_bounds = array<i64: 1, 128>}, {pipeline_mode = #tpu.pipeline_mode<synchronous>, transform_indices = @transform_5, window_bounds = array<i64: 128, 128>}, {pipeline_mode = #tpu.pipeline_mode<synchronous>, transform_indices = @transform_6, window_bounds = array<i64: 1, 128>}, {transform_indices = @transform_7, window_bounds = array<i64: 16, 128>}]} {
    %c0_i32 = arith.constant 0 : i32
    %0 = arith.cmpi eq, %arg1, %c0_i32 : i32
    %1 = arith.extui %0 : i1 to i32
    %c0_i32_0 = arith.constant 0 : i32
    %2 = arith.cmpi ne, %1, %c0_i32_0 : i32
    scf.if %2 {
      %cst_9 = arith.constant 0.000000e+00 : f32
      %12 = vector.broadcast %cst_9 : f32 to vector<16x128xf32>
      %c0_10 = arith.constant 0 : index
      %c0_11 = arith.constant 0 : index
      %13 = vector.load %arg10[%c0_10, %c0_11] : memref<16x128xf32, #tpu.memory_space<vmem>>, vector<16x128xf32>
      tpu.vector_store %arg10[%c0_10, %c0_11], %12 {strides = array<i32>} : memref<16x128xf32, #tpu.memory_space<vmem>>, vector<16x128xf32>,
    } else {
    }
    %c0 = arith.constant 0 : index
    %c0_1 = arith.constant 0 : index
    %3 = vector.load %arg10[%c0, %c0_1] : memref<16x128xf32, #tpu.memory_space<vmem>>, vector<16x128xf32>
    %c0_2 = arith.constant 0 : index
    %c0_3 = arith.constant 0 : index
    %4 = vector.load %arg2[%c0_2, %c0_3] : memref<16x384xbf16, #tpu.memory_space<vmem>>, vector<16x384xbf16>
    %c0_4 = arith.constant 0 : index
    %c0_5 = arith.constant 0 : index
    %5 = vector.load %arg3[%c0_4, %c0_5] : memref<384x128xbf16, #tpu.memory_space<vmem>>, vector<384x128xbf16>
    %cst = arith.constant dense<0.000000e+00> : vector<16x128xf32>
    %6 = tpu.matmul %4, %5, %cst {dimension_numbers = #tpu.dot_dimension_numbers<[1], [0], [0], [1], [0, 0, 1, 1], [], []>} : vector<16x384xbf16>, vector<384x128xbf16>, vector<16x128xf32> -> vector<16x128xf32>
    %7 = arith.addf %3, %6 : vector<16x128xf32>
    %c0_6 = arith.constant 0 : index
    %c0_7 = arith.constant 0 : index
    %8 = vector.load %arg10[%c0_6, %c0_7] : memref<16x128xf32, #tpu.memory_space<vmem>>, vector<16x128xf32>
    tpu.vector_store %arg10[%c0_6, %c0_7], %7 {strides = array<i32>} : memref<16x128xf32, #tpu.memory_space<vmem>>, vector<16x128xf32>,
    %c1_i32 = arith.constant 1 : i32
    %9 = arith.cmpi eq, %arg1, %c1_i32 : i32
    %10 = arith.extui %9 : i1 to i32
    %c0_i32_8 = arith.constant 0 : i32
    %11 = arith.cmpi ne, %10, %c0_i32_8 : i32
    scf.if %11 {
      %c0_9 = arith.constant 0 : index
      %c0_10 = arith.constant 0 : index
      %12 = vector.load %arg10[%c0_9, %c0_10] : memref<16x128xf32, #tpu.memory_space<vmem>>, vector<16x128xf32>
      %c0_11 = arith.constant 0 : index
      %c0_12 = arith.constant 0 : index
      %13 = vector.load %arg4[%c0_11, %c0_12] : memref<1x128xf32, #tpu.memory_space<vmem>>, vector<1x128xf32>
      %14 = vector.broadcast %13 : vector<1x128xf32> to vector<16x128xf32>
      %15 = arith.addf %12, %14 : vector<16x128xf32>
      %16 = arith.truncf %15 : vector<16x128xf32> to vector<16x128xbf16>
      %c0_13 = arith.constant 0 : index
      %c0_14 = arith.constant 0 : index
      %17 = vector.load %arg5[%c0_13, %c0_14] : memref<128x128xbf16, #tpu.memory_space<vmem>>, vector<128x128xbf16>
      %cst_15 = arith.constant dense<0.000000e+00> : vector<16x128xf32>
      %18 = tpu.matmul %16, %17, %cst_15 {dimension_numbers = #tpu.dot_dimension_numbers<[1], [0], [0], [1], [0, 0, 1, 1], [], []>} : vector<16x128xbf16>, vector<128x128xbf16>, vector<16x128xf32> -> vector<16x128xf32>
      %c0_16 = arith.constant 0 : index
      %c0_17 = arith.constant 0 : index
      %19 = vector.load %arg6[%c0_16, %c0_17] : memref<1x128xf32, #tpu.memory_space<vmem>>, vector<1x128xf32>
      %20 = vector.broadcast %19 : vector<1x128xf32> to vector<16x128xf32>
      %21 = arith.addf %18, %20 : vector<16x128xf32>
      %cst_18 = arith.constant 0.000000e+00 : f32
      %22 = vector.broadcast %cst_18 : f32 to vector<16x128xf32>
      %23 = arith.maximumf %21, %22 : vector<16x128xf32>
      %24 = arith.truncf %23 : vector<16x128xf32> to vector<16x128xbf16>
      %c0_19 = arith.constant 0 : index
      %c0_20 = arith.constant 0 : index
      %25 = vector.load %arg7[%c0_19, %c0_20] : memref<128x128xbf16, #tpu.memory_space<vmem>>, vector<128x128xbf16>
      %cst_21 = arith.constant dense<0.000000e+00> : vector<16x128xf32>
      %26 = tpu.matmul %24, %25, %cst_21 {dimension_numbers = #tpu.dot_dimension_numbers<[1], [0], [0], [1], [0, 0, 1, 1], [], []>} : vector<16x128xbf16>, vector<128x128xbf16>, vector<16x128xf32> -> vector<16x128xf32>
      %c0_22 = arith.constant 0 : index
      %c0_23 = arith.constant 0 : index
      %27 = vector.load %arg8[%c0_22, %c0_23] : memref<1x128xf32, #tpu.memory_space<vmem>>, vector<1x128xf32>
      %28 = vector.broadcast %27 : vector<1x128xf32> to vector<16x128xf32>
      %29 = arith.addf %26, %28 : vector<16x128xf32>
      %30 = arith.mulf %29, %29 : vector<16x128xf32>
      %cst_24 = arith.constant dense<0.000000e+00> : vector<16xf32>
      %31 = vector.multi_reduction <add>, %30, %cst_24 [1] : vector<16x128xf32> to vector<16xf32>
      %32 = vector.shape_cast %31 : vector<16xf32> to vector<16x1xf32>
      %cst_25 = arith.constant 1.000000e-24 : f32
      %33 = vector.broadcast %cst_25 : f32 to vector<16x1xf32>
      %34 = arith.maximumf %32, %33 : vector<16x1xf32>
      %35 = math.rsqrt %34 : vector<16x1xf32>
      %36 = vector.broadcast %35 : vector<16x1xf32> to vector<16x128xf32>
      %37 = arith.mulf %29, %36 : vector<16x128xf32>
      %c0_26 = arith.constant 0 : index
      %c0_27 = arith.constant 0 : index
      %38 = vector.load %arg9[%c0_26, %c0_27] : memref<16x128xf32, #tpu.memory_space<vmem>>, vector<16x128xf32>
      tpu.vector_store %arg9[%c0_26, %c0_27], %37 {strides = array<i32>} : memref<16x128xf32, #tpu.memory_space<vmem>>, vector<16x128xf32>,
    } else {
    }
    return
  }
  func.func @transform_0(%arg0: i32, %arg1: i32) -> (i32, i32) {
    %c0_i32 = arith.constant 0 : i32
    return %arg0, %arg1 : i32, i32
  }
  func.func @transform_1(%arg0: i32, %arg1: i32) -> (i32, i32) {
    %c0_i32 = arith.constant 0 : i32
    %c0_i32_0 = arith.constant 0 : i32
    return %arg1, %c0_i32 : i32, i32
  }
  func.func @transform_2(%arg0: i32, %arg1: i32) -> (i32, i32) {
    %c0_i32 = arith.constant 0 : i32
    %c0_i32_0 = arith.constant 0 : i32
    %c0_i32_1 = arith.constant 0 : i32
    return %c0_i32, %c0_i32_0 : i32, i32
  }
  func.func @transform_3(%arg0: i32, %arg1: i32) -> (i32, i32) {
    %c0_i32 = arith.constant 0 : i32
    %c0_i32_0 = arith.constant 0 : i32
    %c0_i32_1 = arith.constant 0 : i32
    return %c0_i32, %c0_i32_0 : i32, i32
  }
  func.func @transform_4(%arg0: i32, %arg1: i32) -> (i32, i32) {
    %c0_i32 = arith.constant 0 : i32
    %c0_i32_0 = arith.constant 0 : i32
    %c0_i32_1 = arith.constant 0 : i32
    return %c0_i32, %c0_i32_0 : i32, i32
  }
  func.func @transform_5(%arg0: i32, %arg1: i32) -> (i32, i32) {
    %c0_i32 = arith.constant 0 : i32
    %c0_i32_0 = arith.constant 0 : i32
    %c0_i32_1 = arith.constant 0 : i32
    return %c0_i32, %c0_i32_0 : i32, i32
  }
  func.func @transform_6(%arg0: i32, %arg1: i32) -> (i32, i32) {
    %c0_i32 = arith.constant 0 : i32
    %c0_i32_0 = arith.constant 0 : i32
    %c0_i32_1 = arith.constant 0 : i32
    return %c0_i32, %c0_i32_0 : i32, i32
  }
  func.func @transform_7(%arg0: i32, %arg1: i32) -> (i32, i32) {
    %c0_i32 = arith.constant 0 : i32
    %c0_i32_0 = arith.constant 0 : i32
    return %arg0, %c0_i32 : i32, i32
  }
}

</mosaic_0001>

<llo_original>
// kernel: tpu_custom_call.1
$region0: #{tpu_custom_call.1}
  #allocation0 [shape = 'u32[]', space=smem, size = 0x4, offset = 0x4, fixed_abs, tag = 'smem constant byte address 0x4 - core index']
  #allocation1 [shape = 'u32[144,128]{1,0:T(1,128)}', space=vmem, size = 0x12000, scoped, tag = 'internal scratch']
  #allocation2 [shape = 'f32[16,128]{1,0:T(8,128)}', space=vmem, size = 0x2000, scoped, tag = 'scratch operand']
  %s0 = inlined_call_operand.hbm [shape: bf16[16,768], index: 0, kind: input, shape index: {}]
  %s1 = inlined_call_operand.hbm [shape: bf16[768,128], index: 1, kind: input, shape index: {}]
  %s2 = inlined_call_operand.vmem [shape: f32[1,128], index: 2, kind: input, shape index: {}]
  %s3 = inlined_call_operand.hbm [shape: bf16[128,128], index: 3, kind: input, shape index: {}]
  %s4 = inlined_call_operand.vmem [shape: f32[1,128], index: 4, kind: input, shape index: {}]
  %s5 = inlined_call_operand.hbm [shape: bf16[128,128], index: 5, kind: input, shape index: {}]
  %s6 = inlined_call_operand.vmem [shape: f32[1,128], index: 6, kind: input, shape index: {}]
  %s7 = inlined_call_operand.hbm [shape: f32[16,128], index: 7, kind: output, shape index: {}]
  %s8 = sld [smem:[#allocation0]]
  $region85: #{tpu_custom_call.1} parent=0
    _
  %s10 = ssub.s32 1, %s8
  %s11 = scalar_select 0, %s10, %s8
  $region1: #{tpu_custom_call.1} parent=0
    #allocation3 [shape = 'u8[24576]{0}', space=vmem, size = 0x6000, scoped, tag = 'input window, operand 0']
    #allocation4 [shape = 's32[2]{0}', space=sflag, size = 0x8, scoped, tag = 'scoped memory for tpu_custom_call.1']
    #allocation5 [shape = 's32[2]{0}', space=sflag, size = 0x8, scoped, tag = 'scoped memory for tpu_custom_call.1']
    #allocation6 [shape = 'u8[196608]{0}', space=vmem, size = 0x30000, scoped, tag = 'input window, operand 1']
    #allocation7 [shape = 's32[2]{0}', space=sflag, size = 0x8, scoped, tag = 'scoped memory for tpu_custom_call.1']
    #allocation8 [shape = 'u8[32768]{0}', space=vmem, size = 0x8000, scoped, tag = 'input window, operand 3, single buffered']
    #allocation9 [shape = 'u8[32768]{0}', space=vmem, size = 0x8000, scoped, tag = 'input window, operand 5, single buffered']
    #allocation10 [shape = 's32[1]{0}', space=sflag, size = 0x4, scoped, tag = 'scoped memory for tpu_custom_call.1']
    #allocation11 [shape = 'u8[8192]{0}', space=vmem, size = 0x2000, scoped, tag = 'output window, operand 0, single buffered']
    %12 = vsyncpa [#allocation4], 0
    %s13 = scalar_lea.sflag [#allocation4], 1
    %14 = vsyncpa %s13, 0
    %15 = vsyncpa [#allocation7], 0
    %s16 = scalar_lea.sflag [#allocation7], 1
    %17 = vsyncpa %s16, 0
    %18 = vsyncpa [#allocation10], 0
    %19 = vsyncpa [#allocation5], 0
    loop: start=0, step=1, limit=4
    $region2: #{tpu_custom_call.1} parent=1 // loop_pre_header
      _
    $region3: #{tpu_custom_call.1} parent=1 // loop_header
      %s21 = sphi 0, %s25
      %p22 = scmp.ge.s32.totalorder %s21, 4
      %s28 = sphi 0, %s40
      %s29 = sphi 0, %s36
      %s30 = sphi 0, %s28
      %s31 = sphi 0, %s29
      %s32 = sphi 0, %s30
      %s33 = sphi 0, %s31
      %s45 = sphi 0, %s47
      %s48 = sphi 0, %s45
      %s49 = sphi 0, %s48
      %s65 = sphi 0, %s49
      %s71 = sphi 0, %s73
      %s74 = sphi 0, %s71
      %s75 = sphi 0, %s74
      %s91 = sphi 0, %s75
      %s95 = sphi 0, %s95
      %s97 = sphi 0, %s95
      %s98 = sphi 0, %s97
      %s112 = sphi 0, %s98
      %s116 = sphi 0, %s116
      %s118 = sphi 0, %s116
      %s119 = sphi 0, %s118
      %s133 = sphi 0, %s119
      %s137 = sphi 0, %s137
      %s139 = sphi 0, %s137
      %s140 = sphi 0, %s139
      %s154 = sphi 0, %s140
      %s158 = sphi 0, %s158
      %s160 = sphi 0, %s158
      %s161 = sphi 0, %s160
      %s175 = sphi 0, %s161
      %s179 = sphi 0, %s179
      %s181 = sphi 0, %s179
      %s182 = sphi 0, %s181
      %s196 = sphi 0, %s182
      %s202 = sphi 0, %s204
      %s205 = sphi 0, %s202
      %s206 = sphi 0, %s205
      %s222 = sphi 0, %s206
    $region4: #{tpu_custom_call.1} parent=1 // loop_header_branch
      %24 = sbr.rel (%p22) target = $region8
    $region5: #{tpu_custom_call.1} parent=1 // loop_body
      %s26 = ssub.s32 %s21, 1
      %s27 = ssub.s32 %s21, 2
      %s34 = sadd.s32 1, %s29
      %p35 = scmp.ge.s32.totalorder %s34, 2
      %s36 = scalar_select %p35, 0, %s34
      %s37 = sadd.s32 1, %s28
      %s38 = scalar_select %p35, %s37, %s28
      %p39 = scmp.ge.s32.totalorder %s38, 1
      %s40 = scalar_select %p39, 0, %s38
      %s41 = ssub.s32 %s28, %s40
      %s42 = ssub.s32 %s29, %s36
      %s43 = sor.u32 %s41, %s42
      %p44 = scmp.eq.s32.totalorder %s43, 0
      %s46 = sadd.s32 %s45, 1
      %s47 = scalar_select %p44, %s45, %s46
      %p50 = pneg %p44
      %p51 = scmp.eq.s32.totalorder %s21, 1
      %p52 = por %p50, %p51
      %p53 = scmp.ne.s32.totalorder %s45, %s48
      %p54 = scmp.eq.s32.totalorder %s21, 0
      %p55 = por %p53, %p54
      %p56 = scmp.ne.s32.totalorder %s45, %s48
      %p57 = scmp.eq.s32.totalorder %s26, 1
      %p58 = por %p56, %p57
      %p59 = scmp.ne.s32.totalorder %s48, %s49
      %p60 = scmp.eq.s32.totalorder %s26, 0
      %p61 = por %p59, %p60
      %p62 = scmp.ne.s32.totalorder %s48, %s49
      %p63 = scmp.eq.s32.totalorder %s27, 1
      %p64 = por %p62, %p63
      %p66 = scmp.ne.s32.totalorder %s49, %s65
      %p67 = scmp.eq.s32.totalorder %s27, 0
      %p68 = por %p66, %p67
      %s69 = ssub.s32 %s29, %s36
      %p70 = scmp.eq.s32.totalorder %s69, 0
      %s72 = sadd.s32 %s71, 1
      %s73 = scalar_select %p70, %s71, %s72
      %p76 = pneg %p70
      %p77 = scmp.eq.s32.totalorder %s21, 1
      %p78 = por %p76, %p77
      %p79 = scmp.ne.s32.totalorder %s71, %s74
      %p80 = scmp.eq.s32.totalorder %s21, 0
      %p81 = por %p79, %p80
      %p82 = scmp.ne.s32.totalorder %s71, %s74
      %p83 = scmp.eq.s32.totalorder %s26, 1
      %p84 = por %p82, %p83
      %p85 = scmp.ne.s32.totalorder %s74, %s75
      %p86 = scmp.eq.s32.totalorder %s26, 0
      %p87 = por %p85, %p86
      %p88 = scmp.ne.s32.totalorder %s74, %s75
      %p89 = scmp.eq.s32.totalorder %s27, 1
      %p90 = por %p88, %p89
      %p92 = scmp.ne.s32.totalorder %s75, %s91
      %p93 = scmp.eq.s32.totalorder %s27, 0
      %p94 = por %p92, %p93
      %s96 = sadd.s32 %s95, 1
      %p99 = scmp.eq.s32.totalorder %s21, 1
      %p100 = scmp.ne.s32.totalorder %s95, %s97
      %p101 = scmp.eq.s32.totalorder %s21, 0
      %p102 = por %p100, %p101
      %p103 = scmp.ne.s32.totalorder %s95, %s97
      %p104 = scmp.eq.s32.totalorder %s26, 1
      %p105 = por %p103, %p104
      %p106 = scmp.ne.s32.totalorder %s97, %s98
      %p107 = scmp.eq.s32.totalorder %s26, 0
      %p108 = por %p106, %p107
      %p109 = scmp.ne.s32.totalorder %s97, %s98
      %p110 = scmp.eq.s32.totalorder %s27, 1
      %p111 = por %p109, %p110
      %p113 = scmp.ne.s32.totalorder %s98, %s112
      %p114 = scmp.eq.s32.totalorder %s27, 0
      %p115 = por %p113, %p114
      %s117 = sadd.s32 %s116, 1
      %p120 = scmp.eq.s32.totalorder %s21, 1
      %p121 = scmp.ne.s32.totalorder %s116, %s118
      %p122 = scmp.eq.s32.totalorder %s21, 0
      %p123 = por %p121, %p122
      %p124 = scmp.ne.s32.totalorder %s116, %s118
      %p125 = scmp.eq.s32.totalorder %s26, 1
      %p126 = por %p124, %p125
      %p127 = scmp.ne.s32.totalorder %s118, %s119
      %p128 = scmp.eq.s32.totalorder %s26, 0
      %p129 = por %p127, %p128
      %p130 = scmp.ne.s32.totalorder %s118, %s119
      %p131 = scmp.eq.s32.totalorder %s27, 1
      %p132 = por %p130, %p131
      %p134 = scmp.ne.s32.totalorder %s119, %s133
      %p135 = scmp.eq.s32.totalorder %s27, 0
      %p136 = por %p134, %p135
      %s138 = sadd.s32 %s137, 1
      %p141 = scmp.eq.s32.totalorder %s21, 1
      %p142 = scmp.ne.s32.totalorder %s137, %s139
      %p143 = scmp.eq.s32.totalorder %s21, 0
      %p144 = por %p142, %p143
      %p145 = scmp.ne.s32.totalorder %s137, %s139
      %p146 = scmp.eq.s32.totalorder %s26, 1
      %p147 = por %p145, %p146
      %p148 = scmp.ne.s32.totalorder %s139, %s140
      %p149 = scmp.eq.s32.totalorder %s26, 0
      %p150 = por %p148, %p149
      %p151 = scmp.ne.s32.totalorder %s139, %s140
      %p152 = scmp.eq.s32.totalorder %s27, 1
      %p153 = por %p151, %p152
      %p155 = scmp.ne.s32.totalorder %s140, %s154
      %p156 = scmp.eq.s32.totalorder %s27, 0
      %p157 = por %p155, %p156
      %s159 = sadd.s32 %s158, 1
      %p162 = scmp.eq.s32.totalorder %s21, 1
      %p163 = scmp.ne.s32.totalorder %s158, %s160
      %p164 = scmp.eq.s32.totalorder %s21, 0
      %p165 = por %p163, %p164
      %p166 = scmp.ne.s32.totalorder %s158, %s160
      %p167 = scmp.eq.s32.totalorder %s26, 1
      %p168 = por %p166, %p167
      %p169 = scmp.ne.s32.totalorder %s160, %s161
      %p170 = scmp.eq.s32.totalorder %s26, 0
      %p171 = por %p169, %p170
      %p172 = scmp.ne.s32.totalorder %s160, %s161
      %p173 = scmp.eq.s32.totalorder %s27, 1
      %p174 = por %p172, %p173
      %p176 = scmp.ne.s32.totalorder %s161, %s175
      %p177 = scmp.eq.s32.totalorder %s27, 0
      %p178 = por %p176, %p177
      %s180 = sadd.s32 %s179, 1
      %p183 = scmp.eq.s32.totalorder %s21, 1
      %p184 = scmp.ne.s32.totalorder %s179, %s181
      %p185 = scmp.eq.s32.totalorder %s21, 0
      %p186 = por %p184, %p185
      %p187 = scmp.ne.s32.totalorder %s179, %s181
      %p188 = scmp.eq.s32.totalorder %s26, 1
      %p189 = por %p187, %p188
      %p190 = scmp.ne.s32.totalorder %s181, %s182
      %p191 = scmp.eq.s32.totalorder %s26, 0
      %p192 = por %p190, %p191
      %p193 = scmp.ne.s32.totalorder %s181, %s182
      %p194 = scmp.eq.s32.totalorder %s27, 1
      %p195 = por %p193, %p194
      %p197 = scmp.ne.s32.totalorder %s182, %s196
      %p198 = scmp.eq.s32.totalorder %s27, 0
      %p199 = por %p197, %p198
      %s200 = ssub.s32 %s28, %s40
      %p201 = scmp.eq.s32.totalorder %s200, 0
      %s203 = sadd.s32 %s202, 1
      %s204 = scalar_select %p201, %s202, %s203
      %p207 = pneg %p201
      %p208 = scmp.eq.s32.totalorder %s21, 1
      %p209 = por %p207, %p208
      %p210 = scmp.ne.s32.totalorder %s202, %s205
      %p211 = scmp.eq.s32.totalorder %s21, 0
      %p212 = por %p210, %p211
      %p213 = scmp.ne.s32.totalorder %s202, %s205
      %p214 = scmp.eq.s32.totalorder %s26, 1
      %p215 = por %p213, %p214
      %p216 = scmp.ne.s32.totalorder %s205, %s206
      %p217 = scmp.eq.s32.totalorder %s26, 0
      %p218 = por %p216, %p217
      %p219 = scmp.ne.s32.totalorder %s205, %s206
      %p220 = scmp.eq.s32.totalorder %s27, 1
      %p221 = por %p219, %p220
      %p223 = scmp.ne.s32.totalorder %s206, %s222
      %p224 = scmp.eq.s32.totalorder %s27, 0
      %p225 = por %p223, %p224
      %p226 = scmp.le.s32.totalorder 1, %s21
      %p227 = scmp.lt.s32.totalorder %s21, 3
      %p228 = pnand %p226, %p227
      %p229 = pneg %p228
      // Predicated region
      $region9: #{tpu_custom_call.1} parent=5 // pred_check
        _
      $region10: #{tpu_custom_call.1} parent=5 // pred_check_branch
        %231 = sbr.rel (%p228) target = $region12
      $region11: #{tpu_custom_call.1} parent=5 // pred_region
        %s232 = ssub.s32 %s21, 1
        // Predicated region
        $region13: #{tpu_custom_call.1} parent=11 // pred_check
          %p233 = pneg %p108
        $region14: #{tpu_custom_call.1} parent=11 // pred_check_branch
          %235 = sbr.rel (%p233) target = $region16
        $region15: #{tpu_custom_call.1} parent=11 // pred_region
          _
        $region16: #{tpu_custom_call.1} parent=11 // pred_fallthru
          _
        // Predicated region
        $region17: #{tpu_custom_call.1} parent=11 // pred_check
          %p236 = pneg %p129
        $region18: #{tpu_custom_call.1} parent=11 // pred_check_branch
          %238 = sbr.rel (%p236) target = $region20
        $region19: #{tpu_custom_call.1} parent=11 // pred_region
          %s240 = ssub.s32 1024, 1024
          %241 = vsyncadd [#allocation7], %s240
          %s242 = sshll.u32 [#allocation8], 4
          %s243 = int_to_ptr.vmem [resolvable:$true] %s242
          %248 = dma.hbm_to_vmem [thread:$0]  %s3, 1024, %s243, [#allocation7], 64, 64, 4
        $region20: #{tpu_custom_call.1} parent=11 // pred_fallthru
          _
        // Predicated region
        $region21: #{tpu_custom_call.1} parent=11 // pred_check
          %p249 = pneg %p150
        $region22: #{tpu_custom_call.1} parent=11 // pred_check_branch
          %251 = sbr.rel (%p249) target = $region24
        $region23: #{tpu_custom_call.1} parent=11 // pred_region
          _
        $region24: #{tpu_custom_call.1} parent=11 // pred_fallthru
          _
        // Predicated region
        $region25: #{tpu_custom_call.1} parent=11 // pred_check
          %p252 = pneg %p171
        $region26: #{tpu_custom_call.1} parent=11 // pred_check_branch
          %254 = sbr.rel (%p252) target = $region28
        $region27: #{tpu_custom_call.1} parent=11 // pred_region
          %s256 = ssub.s32 1024, 1024
          %257 = vsyncadd [#allocation10], %s256
          %s258 = sshll.u32 [#allocation9], 4
          %s259 = int_to_ptr.vmem [resolvable:$true] %s258
          %264 = dma.hbm_to_vmem [thread:$0]  %s5, 1024, %s259, [#allocation10], 64, 64, 4
        $region28: #{tpu_custom_call.1} parent=11 // pred_fallthru
          _
        // Predicated region
        $region29: #{tpu_custom_call.1} parent=11 // pred_check
          %p265 = pneg %p192
        $region30: #{tpu_custom_call.1} parent=11 // pred_check_branch
          %267 = sbr.rel (%p265) target = $region32
        $region31: #{tpu_custom_call.1} parent=11 // pred_region
          _
        $region32: #{tpu_custom_call.1} parent=11 // pred_fallthru
          _
      $region12: #{tpu_custom_call.1} parent=5 // pred_fallthru
        _
      %p268 = scmp.lt.s32.totalorder %s21, 2
      // Predicated region
      $region33: #{tpu_custom_call.1} parent=5 // pred_check
        %p269 = pneg %p268
      $region34: #{tpu_custom_call.1} parent=5 // pred_check_branch
        %271 = sbr.rel (%p269) target = $region36
      $region35: #{tpu_custom_call.1} parent=5 // pred_region
        // Predicated region
        $region37: #{tpu_custom_call.1} parent=35 // pred_check
          %p272 = pneg %p55
        $region38: #{tpu_custom_call.1} parent=35 // pred_check_branch
          %274 = sbr.rel (%p272) target = $region40
        $region39: #{tpu_custom_call.1} parent=35 // pred_region
          %s275 = sand.u32 %s45, 1
          %s276 = scalar_lea.sflag [#allocation4], %s275
          %s277 = sand.u32 %s45, 1
          %s278 = smul.addr %s277, 24
          %s279 = scalar_lea.vmem [#allocation3], %s278
          %s280 = smul.u32 2, %s28
          %s281 = smul.u32 3, %s29
          %s283 = ssub.s32 384, 384
          %284 = vsyncadd %s276, %s283
          %s285 = smul.addr %s280, 6
          %s286 = sadd.s32 %s281, %s285
          %s287 = smul.addr %s286, 64
          %s288 = scalar_lea.hbm %s0, %s287
          %s289 = sshll.u32 %s279, 4
          %s290 = int_to_ptr.vmem [resolvable:$true] %s289
          %295 = dma.hbm_to_vmem [thread:$0]  %s288, 384, %s290, %s276, 384, 192, 12
        $region40: #{tpu_custom_call.1} parent=35 // pred_fallthru
          _
        // Predicated region
        $region41: #{tpu_custom_call.1} parent=35 // pred_check
          %p296 = pneg %p81
        $region42: #{tpu_custom_call.1} parent=35 // pred_check_branch
          %298 = sbr.rel (%p296) target = $region44
        $region43: #{tpu_custom_call.1} parent=35 // pred_region
          %s299 = sand.u32 %s21, 1
          %s300 = scalar_lea.sflag [#allocation7], %s299
          %s301 = sand.u32 %s71, 1
          %s302 = smul.addr %s301, 192
          %s303 = scalar_lea.vmem [#allocation6], %s302
          %s304 = smul.u32 48, %s29
          %s306 = ssub.s32 3072, 3072
          %307 = vsyncadd %s300, %s306
          %s308 = smul.addr %s304, 64
          %s309 = scalar_lea.hbm %s1, %s308
          %s310 = sshll.u32 %s303, 4
          %s311 = int_to_ptr.vmem [resolvable:$true] %s310
          %316 = dma.hbm_to_vmem [thread:$0]  %s309, 3072, %s311, %s300, 64, 64, 4
        $region44: #{tpu_custom_call.1} parent=35 // pred_fallthru
          _
      $region36: #{tpu_custom_call.1} parent=5 // pred_fallthru
        _
      %p317 = scmp.le.s32.totalorder 1, %s21
      %p318 = scmp.lt.s32.totalorder %s21, 3
      %p319 = pnand %p317, %p318
      %p320 = pneg %p319
      // Predicated region
      $region45: #{tpu_custom_call.1} parent=5 // pred_check
        _
      $region46: #{tpu_custom_call.1} parent=5 // pred_check_branch
        %322 = sbr.rel (%p319) target = $region48
      $region47: #{tpu_custom_call.1} parent=5 // pred_region
        %s323 = ssub.s32 %s21, 1
        %s324 = sand.u32 %s48, 1
        %s325 = scalar_lea.sflag [#allocation4], %s324
        %s326 = sand.u32 %s48, 1
        %s327 = smul.addr %s326, 24
        %s328 = scalar_lea.vmem [#allocation3], %s327
        // Predicated region
        $region49: #{tpu_custom_call.1} parent=47 // pred_check
          %p329 = pneg %p61
        $region50: #{tpu_custom_call.1} parent=47 // pred_check_branch
          %331 = sbr.rel (%p329) target = $region52
        $region51: #{tpu_custom_call.1} parent=47 // pred_region
          %332 = dma.done %s325, 384
        $region52: #{tpu_custom_call.1} parent=47 // pred_fallthru
          _
        %s333 = sand.u32 %s26, 1
        %s334 = scalar_lea.sflag [#allocation7], %s333
        %s335 = sand.u32 %s74, 1
        %s336 = smul.addr %s335, 192
        %s337 = scalar_lea.vmem [#allocation6], %s336
        // Predicated region
        $region53: #{tpu_custom_call.1} parent=47 // pred_check
          %p338 = pneg %p87
        $region54: #{tpu_custom_call.1} parent=47 // pred_check_branch
          %340 = sbr.rel (%p338) target = $region56
        $region55: #{tpu_custom_call.1} parent=47 // pred_region
          %341 = dma.done %s334, 3072
        $region56: #{tpu_custom_call.1} parent=47 // pred_fallthru
          _
        // Predicated region
        $region57: #{tpu_custom_call.1} parent=47 // pred_check
          %p342 = pneg %p129
        $region58: #{tpu_custom_call.1} parent=47 // pred_check_branch
          %344 = sbr.rel (%p342) target = $region60
        $region59: #{tpu_custom_call.1} parent=47 // pred_region
          %345 = dma.done [#allocation7], 1024
        $region60: #{tpu_custom_call.1} parent=47 // pred_fallthru
          _
        // Predicated region
        $region61: #{tpu_custom_call.1} parent=47 // pred_check
          %p346 = pneg %p171
        $region62: #{tpu_custom_call.1} parent=47 // pred_check_branch
          %348 = sbr.rel (%p346) target = $region64
        $region63: #{tpu_custom_call.1} parent=47 // pred_region
          %349 = dma.done [#allocation10], 1024
        $region64: #{tpu_custom_call.1} parent=47 // pred_fallthru
          _
        %s350 = sand.u32 %s48, 1
        %s351 = scalar_lea.sflag [#allocation4], %s350
        %s352 = sand.u32 %s48, 1
        %s353 = smul.addr %s352, 24
        %s354 = scalar_lea.vmem [#allocation3], %s353
        %p355 = pneg %p61
        %p356 = pneg %p58
        %s357 = sand.u32 %s26, 1
        %s358 = scalar_lea.sflag [#allocation7], %s357
        %s359 = sand.u32 %s74, 1
        %s360 = smul.addr %s359, 192
        %s361 = scalar_lea.vmem [#allocation6], %s360
        %p362 = pneg %p87
        %p363 = pneg %p84
        %p364 = pneg %p108
        %p365 = pneg %p105
        %p366 = pneg %p129
        %p367 = pneg %p126
        %p368 = pneg %p150
        %p369 = pneg %p147
        %p370 = pneg %p171
        %p371 = pneg %p168
        %p372 = pneg %p192
        %p373 = pneg %p189
        %p374 = pneg %p218
        %p375 = pneg %p215
        %s376 = smul.u32 2, %s30
        %s377 = smul.u32 3, %s31
        %s378 = smul.u32 48, %s31
        %s379 = smul.u32 2, %s30
        %p381 = scmp.eq.s32.totalorder %s31, 0
        // Predicated region
        $region65: #{tpu_custom_call.1} parent=47 // pred_check
          %p382 = pneg %p381
        $region66: #{tpu_custom_call.1} parent=47 // pred_check_branch
          %384 = sbr.rel (%p382) target = $region68
        $region67: #{tpu_custom_call.1} parent=47 // pred_region
          %385 = vst [vmem:[#allocation2] sm:$0xff] 0.0
          %386 = vst [vmem:[#allocation2 + $0x8] sm:$0xff] 0.0
        $region68: #{tpu_custom_call.1} parent=47 // pred_fallthru
          _
        %v387 = vld [vmem:[#allocation2] sm:$0xff]
        %v388 = vld [vmem:[#allocation2 + $0x8] sm:$0xff]
        %v389 = vld [vmem:[%s328] sm:$0xff]
        %v390 = vld [vmem:[%s328 + $0x8] sm:$0xf]
        %v391 = vld [vmem:[%s328 + $0xc] sm:$0xff]
        %v392 = vld [vmem:[%s328 + $0x14] sm:$0xf]
        %v393 = vld [vmem:[%s337] sm:$0xf]
        %v394 = vld [vmem:[%s337 + $0x4] sm:$0xf]
        %v395 = vld [vmem:[%s337 + $0x8] sm:$0xf]
        %v396 = vld [vmem:[%s337 + $0xc] sm:$0xf]
        %v397 = vld [vmem:[%s337 + $0x10] sm:$0xf]
        %v398 = vld [vmem:[%s337 + $0x14] sm:$0xf]
        %v399 = vld [vmem:[%s337 + $0x18] sm:$0xf]
        %v400 = vld [vmem:[%s337 + $0x1c] sm:$0xf]
        %v401 = vld [vmem:[%s337 + $0x20] sm:$0xf]
        %v402 = vld [vmem:[%s337 + $0x24] sm:$0xf]
        %v403 = vld [vmem:[%s337 + $0x28] sm:$0xf]
        %v404 = vld [vmem:[%s337 + $0x2c] sm:$0xf]
        %v405 = vld [vmem:[%s337 + $0x30] sm:$0xf]
        %v406 = vld [vmem:[%s337 + $0x34] sm:$0xf]
        %v407 = vld [vmem:[%s337 + $0x38] sm:$0xf]
        %v408 = vld [vmem:[%s337 + $0x3c] sm:$0xf]
        %v409 = vld [vmem:[%s337 + $0x40] sm:$0xf]
        %v410 = vld [vmem:[%s337 + $0x44] sm:$0xf]
        %v411 = vld [vmem:[%s337 + $0x48] sm:$0xf]
        %v412 = vld [vmem:[%s337 + $0x4c] sm:$0xf]
        %v413 = vld [vmem:[%s337 + $0x50] sm:$0xf]
        %v414 = vld [vmem:[%s337 + $0x54] sm:$0xf]
        %v415 = vld [vmem:[%s337 + $0x58] sm:$0xf]
        %v416 = vld [vmem:[%s337 + $0x5c] sm:$0xf]
        %v417 = vld [vmem:[%s337 + $0x60] sm:$0xf]
        %v418 = vld [vmem:[%s337 + $0x64] sm:$0xf]
        %v419 = vld [vmem:[%s337 + $0x68] sm:$0xf]
        %v420 = vld [vmem:[%s337 + $0x6c] sm:$0xf]
        %v421 = vld [vmem:[%s337 + $0x70] sm:$0xf]
        %v422 = vld [vmem:[%s337 + $0x74] sm:$0xf]
        %v423 = vld [vmem:[%s337 + $0x78] sm:$0xf]
        %v424 = vld [vmem:[%s337 + $0x7c] sm:$0xf]
        %v425 = vld [vmem:[%s337 + $0x80] sm:$0xf]
        %v426 = vld [vmem:[%s337 + $0x84] sm:$0xf]
        %v427 = vld [vmem:[%s337 + $0x88] sm:$0xf]
        %v428 = vld [vmem:[%s337 + $0x8c] sm:$0xf]
        %v429 = vld [vmem:[%s337 + $0x90] sm:$0xf]
        %v430 = vld [vmem:[%s337 + $0x94] sm:$0xf]
        %v431 = vld [vmem:[%s337 + $0x98] sm:$0xf]
        %v432 = vld [vmem:[%s337 + $0x9c] sm:$0xf]
        %v433 = vld [vmem:[%s337 + $0xa0] sm:$0xf]
        %v434 = vld [vmem:[%s337 + $0xa4] sm:$0xf]
        %v435 = vld [vmem:[%s337 + $0xa8] sm:$0xf]
        %v436 = vld [vmem:[%s337 + $0xac] sm:$0xf]
        %v437 = vld [vmem:[%s337 + $0xb0] sm:$0xf]
        %v438 = vld [vmem:[%s337 + $0xb4] sm:$0xf]
        %v439 = vld [vmem:[%s337 + $0xb8] sm:$0xf]
        %v440 = vld [vmem:[%s337 + $0xbc] sm:$0xf]
        %v445 = vunpack.c.l.b16 %v389
        %v446 = vunpack.c.h.b16 %v389
        %v447 = vunpack.c.l.b16 %v390
        %v448 = vunpack.c.l.b16 %v391
        %v449 = vunpack.c.h.b16 %v391
        %v450 = vunpack.c.l.b16 %v392
        %v451 = vpack.c.b16 %v448, %v445
        %v452 = vpack.c.b16 %v449, %v446
        %v453 = vpack.c.b16 %v450, %v447
        %v505 = vunpack.c.l.b16 %v393
        %v506 = vunpack.c.l.b16 %v394
        %v507 = vunpack.c.l.b16 %v395
        %v508 = vunpack.c.l.b16 %v396
        %v509 = vunpack.c.l.b16 %v397
        %v510 = vunpack.c.l.b16 %v398
        %v511 = vunpack.c.l.b16 %v399
        %v512 = vunpack.c.l.b16 %v400
        %v513 = vunpack.c.l.b16 %v401
        %v514 = vunpack.c.l.b16 %v402
        %v515 = vunpack.c.l.b16 %v403
        %v516 = vunpack.c.l.b16 %v404
        %v517 = vunpack.c.l.b16 %v405
        %v518 = vunpack.c.l.b16 %v406
        %v519 = vunpack.c.l.b16 %v407
        %v520 = vunpack.c.l.b16 %v408
        %v521 = vunpack.c.l.b16 %v409
        %v522 = vunpack.c.l.b16 %v410
        %v523 = vunpack.c.l.b16 %v411
        %v524 = vunpack.c.l.b16 %v412
        %v525 = vunpack.c.l.b16 %v413
        %v526 = vunpack.c.l.b16 %v414
        %v527 = vunpack.c.l.b16 %v415
        %v528 = vunpack.c.l.b16 %v416
        %v529 = vunpack.c.l.b16 %v417
        %v530 = vunpack.c.l.b16 %v418
        %v531 = vunpack.c.l.b16 %v419
        %v532 = vunpack.c.l.b16 %v420
        %v533 = vunpack.c.l.b16 %v421
        %v534 = vunpack.c.l.b16 %v422
        %v535 = vunpack.c.l.b16 %v423
        %v536 = vunpack.c.l.b16 %v424
        %v537 = vunpack.c.l.b16 %v425
        %v538 = vunpack.c.l.b16 %v426
        %v539 = vunpack.c.l.b16 %v427
        %v540 = vunpack.c.l.b16 %v428
        %v541 = vunpack.c.l.b16 %v429
        %v542 = vunpack.c.l.b16 %v430
        %v543 = vunpack.c.l.b16 %v431
        %v544 = vunpack.c.l.b16 %v432
        %v545 = vunpack.c.l.b16 %v433
        %v546 = vunpack.c.l.b16 %v434
        %v547 = vunpack.c.l.b16 %v435
        %v548 = vunpack.c.l.b16 %v436
        %v549 = vunpack.c.l.b16 %v437
        %v550 = vunpack.c.l.b16 %v438
        %v551 = vunpack.c.l.b16 %v439
        %v552 = vunpack.c.l.b16 %v440
        %v553 = vpack.c.b16 %v506, %v505
        %v554 = vpack.c.b16 %v508, %v507
        %v555 = vpack.c.b16 %v510, %v509
        %v556 = vpack.c.b16 %v512, %v511
        %v557 = vpack.c.b16 %v514, %v513
        %v558 = vpack.c.b16 %v516, %v515
        %v559 = vpack.c.b16 %v518, %v517
        %v560 = vpack.c.b16 %v520, %v519
        %v561 = vpack.c.b16 %v522, %v521
        %v562 = vpack.c.b16 %v524, %v523
        %v563 = vpack.c.b16 %v526, %v525
        %v564 = vpack.c.b16 %v528, %v527
        %v565 = vpack.c.b16 %v530, %v529
        %v566 = vpack.c.b16 %v532, %v531
        %v567 = vpack.c.b16 %v534, %v533
        %v568 = vpack.c.b16 %v536, %v535
        %v569 = vpack.c.b16 %v538, %v537
        %v570 = vpack.c.b16 %v540, %v539
        %v571 = vpack.c.b16 %v542, %v541
        %v572 = vpack.c.b16 %v544, %v543
        %v573 = vpack.c.b16 %v546, %v545
        %v574 = vpack.c.b16 %v548, %v547
        %v575 = vpack.c.b16 %v550, %v549
        %v576 = vpack.c.b16 %v552, %v551
        %601 = vmatprep.subr.bf16.mxu0 0
        %602 = vmatpush1.bf16.msra.mxu0 %v553
        %603 = vmatprep.subr.bf16.mxu0 0
        %604 = vmatpush1.bf16.msra.mxu0 %v554
        %605 = vmatprep.subr.bf16.mxu0 0
        %606 = vmatpush1.bf16.msra.mxu0 %v555
        %607 = vmatprep.subr.bf16.mxu0 0
        %608 = vmatpush1.bf16.msra.mxu0 %v556
        %609 = vmatprep.subr.bf16.mxu0 0
        %610 = vmatpush1.bf16.msra.mxu0 %v557
        %611 = vmatprep.subr.bf16.mxu0 0
        %612 = vmatpush1.bf16.msra.mxu0 %v558
        %613 = vmatprep.subr.bf16.mxu0 0
        %614 = vmatpush1.bf16.msra.mxu0 %v559
        %615 = vmatprep.subr.bf16.mxu0 0
        %616 = vmatpush1.bf16.msra.mxu0 %v560
        %617 = vmatprep.subr.bf16.mxu0 0
        %618 = vmatpush1.bf16.msra.mxu0 %v561
        %619 = vmatprep.subr.bf16.mxu0 0
        %620 = vmatpush1.bf16.msra.mxu0 %v562
        %621 = vmatprep.subr.bf16.mxu0 0
        %622 = vmatpush1.bf16.msra.mxu0 %v563
        %623 = vmatprep.subr.bf16.mxu0 0
        %624 = vmatpush1.bf16.msra.mxu0 %v564
        %625 = vmatprep.subr.bf16.mxu0 0
        %626 = vmatpush1.bf16.msra.mxu0 %v565
        %627 = vmatprep.subr.bf16.mxu0 0
        %628 = vmatpush1.bf16.msra.mxu0 %v566
        %629 = vmatprep.subr.bf16.mxu0 0
        %630 = vmatpush1.bf16.msra.mxu0 %v567
        %631 = vmatprep.subr.bf16.mxu0 0
        %632 = vmatpush1.bf16.msra.mxu0 %v568
        %633 = vmatprep.mubr.bf16.mxu0 %v452
        %634 = vmatmul.mubr.bf16.gmra.mrb[0].mxu0 %v451
        %v635 = vpop.f32.mrb[0].mxu0
        %v636 = vadd.f32 0.0, %v635
        %v637 = vpop.f32.mrb[0].mxu0
        %v638 = vpop.f32.mrb[0].mxu0
        %v639 = vadd.f32 0.0, %v638
        %v640 = vpop.f32.mrb[0].mxu0
        %641 = vdwg.mxu0
        %642 = vmatprep.subr.bf16.mxu0 0
        %643 = vmatpush1.bf16.msra.mxu0 %v569
        %644 = vmatprep.subr.bf16.mxu0 0
        %645 = vmatpush1.bf16.msra.mxu0 %v570
        %646 = vmatprep.subr.bf16.mxu0 0
        %647 = vmatpush1.bf16.msra.mxu0 %v571
        %648 = vmatprep.subr.bf16.mxu0 0
        %649 = vmatpush1.bf16.msra.mxu0 %v572
        %650 = vmatprep.subr.bf16.mxu0 0
        %651 = vmatpush1.bf16.msra.mxu0 %v573
        %652 = vmatprep.subr.bf16.mxu0 0
        %653 = vmatpush1.bf16.msra.mxu0 %v574
        %654 = vmatprep.subr.bf16.mxu0 0
        %655 = vmatpush1.bf16.msra.mxu0 %v575
        %656 = vmatprep.subr.bf16.mxu0 0
        %657 = vmatpush1.bf16.msra.mxu0 %v576
        %658 = vmatprep.subr.bf16.mxu0 0
        %659 = vmatpush1.bf16.msra.mxu0 0
        %660 = vmatprep.subr.bf16.mxu0 0
        %661 = vmatpush1.bf16.msra.mxu0 0
        %662 = vmatprep.subr.bf16.mxu0 0
        %663 = vmatpush1.bf16.msra.mxu0 0
        %664 = vmatprep.subr.bf16.mxu0 0
        %665 = vmatpush1.bf16.msra.mxu0 0
        %666 = vmatprep.subr.bf16.mxu0 0
        %667 = vmatpush1.bf16.msra.mxu0 0
        %668 = vmatprep.subr.bf16.mxu0 0
        %669 = vmatpush1.bf16.msra.mxu0 0
        %670 = vmatprep.subr.bf16.mxu0 0
        %671 = vmatpush1.bf16.msra.mxu0 0
        %672 = vmatprep.subr.bf16.mxu0 0
        %673 = vmatpush1.bf16.msra.mxu0 0
        %674 = vmatprep.mubr.bf16.mxu0 0
        %675 = vmatmul.mubr.bf16.gmra.mrb[0].mxu0 %v453
        %v676 = vpop.f32.mrb[0].mxu0
        %v677 = vadd.f32 %v636, %v676
        %v678 = vpop.f32.mrb[0].mxu0
        %v679 = vpop.f32.mrb[0].mxu0
        %v680 = vadd.f32 %v639, %v679
        %v681 = vpop.f32.mrb[0].mxu0
        %682 = vdwg.mxu0
        %v683 = vadd.f32 %v387, %v677
        %v684 = vadd.f32 %v388, %v680
        %685 = vst [vmem:[#allocation2] sm:$0xff] %v683
        %686 = vst [vmem:[#allocation2 + $0x8] sm:$0xff] %v684
        %p687 = scmp.eq.s32.totalorder %s31, 1
        // Predicated region
        $region69: #{tpu_custom_call.1} parent=47 // pred_check
          %p688 = pneg %p687
        $region70: #{tpu_custom_call.1} parent=47 // pred_check_branch
          %690 = sbr.rel (%p688) target = $region72
        $region71: #{tpu_custom_call.1} parent=47 // pred_region
          %v691 = vld [vmem:[#allocation2] sm:$0xff]
          %v692 = vld [vmem:[#allocation2 + $0x8] sm:$0xff]
          %v693 = vld [vmem:[%s2] sm:$0x1]
          %v695 = vlaneseq
          %v696 = vshrl.u32 %v695, 7
          %v697 = vsub.s32 0, %v696
          %v698 = vrot.slane %v693, %v697
          %v700 = vadd.f32 %v691, %v698
          %v701 = vadd.f32 %v692, %v698
          %v702 = vpack.c.bf16 %v701, %v700
          %v703 = vld [vmem:[#allocation8] sm:$0xf]
          %v704 = vld [vmem:[#allocation8 + $0x4] sm:$0xf]
          %v705 = vld [vmem:[#allocation8 + $0x8] sm:$0xf]
          %v706 = vld [vmem:[#allocation8 + $0xc] sm:$0xf]
          %v707 = vld [vmem:[#allocation8 + $0x10] sm:$0xf]
          %v708 = vld [vmem:[#allocation8 + $0x14] sm:$0xf]
          %v709 = vld [vmem:[#allocation8 + $0x18] sm:$0xf]
          %v710 = vld [vmem:[#allocation8 + $0x1c] sm:$0xf]
          %v711 = vld [vmem:[#allocation8 + $0x20] sm:$0xf]
          %v712 = vld [vmem:[#allocation8 + $0x24] sm:$0xf]
          %v713 = vld [vmem:[#allocation8 + $0x28] sm:$0xf]
          %v714 = vld [vmem:[#allocation8 + $0x2c] sm:$0xf]
          %v715 = vld [vmem:[#allocation8 + $0x30] sm:$0xf]
          %v716 = vld [vmem:[#allocation8 + $0x34] sm:$0xf]
          %v717 = vld [vmem:[#allocation8 + $0x38] sm:$0xf]
          %v718 = vld [vmem:[#allocation8 + $0x3c] sm:$0xf]
          %v719 = vld [vmem:[%s4] sm:$0x1]
          %v721 = vlaneseq
          %v722 = vshrl.u32 %v721, 7
          %v723 = vsub.s32 0, %v722
          %v724 = vrot.slane %v719, %v723
          %v742 = vunpack.c.l.b16 %v703
          %v743 = vunpack.c.l.b16 %v704
          %v744 = vunpack.c.l.b16 %v705
          %v745 = vunpack.c.l.b16 %v706
          %v746 = vunpack.c.l.b16 %v707
          %v747 = vunpack.c.l.b16 %v708
          %v748 = vunpack.c.l.b16 %v709
          %v749 = vunpack.c.l.b16 %v710
          %v750 = vunpack.c.l.b16 %v711
          %v751 = vunpack.c.l.b16 %v712
          %v752 = vunpack.c.l.b16 %v713
          %v753 = vunpack.c.l.b16 %v714
          %v754 = vunpack.c.l.b16 %v715
          %v755 = vunpack.c.l.b16 %v716
          %v756 = vunpack.c.l.b16 %v717
          %v757 = vunpack.c.l.b16 %v718
          %v758 = vpack.c.b16 %v743, %v742
          %v759 = vpack.c.b16 %v745, %v744
          %v760 = vpack.c.b16 %v747, %v746
          %v761 = vpack.c.b16 %v749, %v748
          %v762 = vpack.c.b16 %v751, %v750
          %v763 = vpack.c.b16 %v753, %v752
          %v764 = vpack.c.b16 %v755, %v754
          %v765 = vpack.c.b16 %v757, %v756
          %774 = vmatprep.subr.bf16.mxu0 0
          %775 = vmatpush1.bf16.msra.mxu0 %v758
          %776 = vmatprep.subr.bf16.mxu0 0
          %777 = vmatpush1.bf16.msra.mxu0 %v759
          %778 = vmatprep.subr.bf16.mxu0 0
          %779 = vmatpush1.bf16.msra.mxu0 %v760
          %780 = vmatprep.subr.bf16.mxu0 0
          %781 = vmatpush1.bf16.msra.mxu0 %v761
          %782 = vmatprep.subr.bf16.mxu0 0
          %783 = vmatpush1.bf16.msra.mxu0 %v762
          %784 = vmatprep.subr.bf16.mxu0 0
          %785 = vmatpush1.bf16.msra.mxu0 %v763
          %786 = vmatprep.subr.bf16.mxu0 0
          %787 = vmatpush1.bf16.msra.mxu0 %v764
          %788 = vmatprep.subr.bf16.mxu0 0
          %789 = vmatpush1.bf16.msra.mxu0 %v765
          %790 = vmatprep.subr.bf16.mxu0 0
          %791 = vmatpush1.bf16.msra.mxu0 0
          %792 = vmatprep.subr.bf16.mxu0 0
          %793 = vmatpush1.bf16.msra.mxu0 0
          %794 = vmatprep.subr.bf16.mxu0 0
          %795 = vmatpush1.bf16.msra.mxu0 0
          %796 = vmatprep.subr.bf16.mxu0 0
          %797 = vmatpush1.bf16.msra.mxu0 0
          %798 = vmatprep.subr.bf16.mxu0 0
          %799 = vmatpush1.bf16.msra.mxu0 0
          %800 = vmatprep.subr.bf16.mxu0 0
          %801 = vmatpush1.bf16.msra.mxu0 0
          %802 = vmatprep.subr.bf16.mxu0 0
          %803 = vmatpush1.bf16.msra.mxu0 0
          %804 = vmatprep.subr.bf16.mxu0 0
          %805 = vmatpush1.bf16.msra.mxu0 0
          %806 = vmatprep.mubr.bf16.mxu0 0
          %807 = vmatmul.mubr.bf16.gmra.mrb[0].mxu0 %v702
          %v808 = vpop.f32.mrb[0].mxu0
          %v809 = vadd.f32 %v724, %v808
          %v810 = vpop.f32.mrb[0].mxu0
          %v811 = vpop.f32.mrb[0].mxu0
          %v812 = vadd.f32 %v724, %v811
          %v813 = vpop.f32.mrb[0].mxu0
          %814 = vdwg.mxu0
          %v815 = vmax.f32 %v809, 0.0
          %v816 = vmax.f32 %v812, 0.0
          %v817 = vpack.c.bf16 %v816, %v815
          %v818 = vld [vmem:[#allocation9] sm:$0xf]
          %v819 = vld [vmem:[#allocation9 + $0x4] sm:$0xf]
          %v820 = vld [vmem:[#allocation9 + $0x8] sm:$0xf]
          %v821 = vld [vmem:[#allocation9 + $0xc] sm:$0xf]
          %v822 = vld [vmem:[#allocation9 + $0x10] sm:$0xf]
          %v823 = vld [vmem:[#allocation9 + $0x14] sm:$0xf]
          %v824 = vld [vmem:[#allocation9 + $0x18] sm:$0xf]
          %v825 = vld [vmem:[#allocation9 + $0x1c] sm:$0xf]
          %v826 = vld [vmem:[#allocation9 + $0x20] sm:$0xf]
          %v827 = vld [vmem:[#allocation9 + $0x24] sm:$0xf]
          %v828 = vld [vmem:[#allocation9 + $0x28] sm:$0xf]
          %v829 = vld [vmem:[#allocation9 + $0x2c] sm:$0xf]
          %v830 = vld [vmem:[#allocation9 + $0x30] sm:$0xf]
          %v831 = vld [vmem:[#allocation9 + $0x34] sm:$0xf]
          %v832 = vld [vmem:[#allocation9 + $0x38] sm:$0xf]
          %v833 = vld [vmem:[#allocation9 + $0x3c] sm:$0xf]
          %v834 = vld [vmem:[%s6] sm:$0x1]
          %v836 = vlaneseq
          %v837 = vshrl.u32 %v836, 7
          %v838 = vsub.s32 0, %v837
          %v839 = vrot.slane %v834, %v838
          %v857 = vunpack.c.l.b16 %v818
          %v858 = vunpack.c.l.b16 %v819
          %v859 = vunpack.c.l.b16 %v820
          %v860 = vunpack.c.l.b16 %v821
          %v861 = vunpack.c.l.b16 %v822
          %v862 = vunpack.c.l.b16 %v823
          %v863 = vunpack.c.l.b16 %v824
          %v864 = vunpack.c.l.b16 %v825
          %v865 = vunpack.c.l.b16 %v826
          %v866 = vunpack.c.l.b16 %v827
          %v867 = vunpack.c.l.b16 %v828
          %v868 = vunpack.c.l.b16 %v829
          %v869 = vunpack.c.l.b16 %v830
          %v870 = vunpack.c.l.b16 %v831
          %v871 = vunpack.c.l.b16 %v832
          %v872 = vunpack.c.l.b16 %v833
          %v873 = vpack.c.b16 %v858, %v857
          %v874 = vpack.c.b16 %v860, %v859
          %v875 = vpack.c.b16 %v862, %v861
          %v876 = vpack.c.b16 %v864, %v863
          %v877 = vpack.c.b16 %v866, %v865
          %v878 = vpack.c.b16 %v868, %v867
          %v879 = vpack.c.b16 %v870, %v869
          %v880 = vpack.c.b16 %v872, %v871
          %889 = vmatprep.subr.bf16.mxu0 0
          %890 = vmatpush1.bf16.msra.mxu0 %v873
          %891 = vmatprep.subr.bf16.mxu0 0
          %892 = vmatpush1.bf16.msra.mxu0 %v874
          %893 = vmatprep.subr.bf16.mxu0 0
          %894 = vmatpush1.bf16.msra.mxu0 %v875
          %895 = vmatprep.subr.bf16.mxu0 0
          %896 = vmatpush1.bf16.msra.mxu0 %v876
          %897 = vmatprep.subr.bf16.mxu0 0
          %898 = vmatpush1.bf16.msra.mxu0 %v877
          %899 = vmatprep.subr.bf16.mxu0 0
          %900 = vmatpush1.bf16.msra.mxu0 %v878
          %901 = vmatprep.subr.bf16.mxu0 0
          %902 = vmatpush1.bf16.msra.mxu0 %v879
          %903 = vmatprep.subr.bf16.mxu0 0
          %904 = vmatpush1.bf16.msra.mxu0 %v880
          %905 = vmatprep.subr.bf16.mxu0 0
          %906 = vmatpush1.bf16.msra.mxu0 0
          %907 = vmatprep.subr.bf16.mxu0 0
          %908 = vmatpush1.bf16.msra.mxu0 0
          %909 = vmatprep.subr.bf16.mxu0 0
          %910 = vmatpush1.bf16.msra.mxu0 0
          %911 = vmatprep.subr.bf16.mxu0 0
          %912 = vmatpush1.bf16.msra.mxu0 0
          %913 = vmatprep.subr.bf16.mxu0 0
          %914 = vmatpush1.bf16.msra.mxu0 0
          %915 = vmatprep.subr.bf16.mxu0 0
          %916 = vmatpush1.bf16.msra.mxu0 0
          %917 = vmatprep.subr.bf16.mxu0 0
          %918 = vmatpush1.bf16.msra.mxu0 0
          %919 = vmatprep.subr.bf16.mxu0 0
          %920 = vmatpush1.bf16.msra.mxu0 0
          %921 = vmatprep.mubr.bf16.mxu0 0
          %922 = vmatmul.mubr.bf16.gmra.mrb[0].mxu0 %v817
          %v923 = vpop.f32.mrb[0].mxu0
          %v924 = vadd.f32 %v839, %v923
          %v925 = vpop.f32.mrb[0].mxu0
          %v926 = vpop.f32.mrb[0].mxu0
          %v927 = vadd.f32 %v839, %v926
          %v928 = vpop.f32.mrb[0].mxu0
          %929 = vdwg.mxu0
          %v930 = vmul.f32 %v924, %v924
          %v931 = vmul.f32 %v927, %v927
          %932 = vadd.xlane.f32.xlu0 %v930
          %v933 = vpop.xlane.xlu0 %932
          %934 = vadd.xlane.f32.xlu0 %v931
          %v935 = vpop.xlane.xlu0 %934
          %v936 = vmax.f32 %v933, 1e-24
          %v937 = vmax.f32 %v935, 1e-24
          %v938 = vrsqrt.pop %v936
          %v939 = vrsqrt.pop %v937
          %v940 = vmul.f32 %v924, %v938
          %v941 = vmul.f32 %v927, %v939
          %942 = vst [vmem:[#allocation11] sm:$0xff] %v940
          %943 = vst [vmem:[#allocation11 + $0x8] sm:$0xff] %v941
        $region72: #{tpu_custom_call.1} parent=47 // pred_fallthru
          _
        // Predicated region
        $region73: #{tpu_custom_call.1} parent=47 // pred_check
          %p944 = pneg %p215
        $region74: #{tpu_custom_call.1} parent=47 // pred_check_branch
          %946 = sbr.rel (%p944) target = $region76
        $region75: #{tpu_custom_call.1} parent=47 // pred_region
          %s947 = smul.u32 2, %s30
          %s949 = ssub.s32 256, 256
          %950 = vsyncadd [#allocation5], %s949
          %s951 = smul.addr %s947, 128
          %s952 = scalar_lea.hbm %s7, %s951
          %s953 = sshll.u32 [#allocation11], 4
          %s954 = int_to_ptr.vmem [resolvable:$true] %s953
          %959 = dma.vmem_to_hbm [thread:$0]  %s954, 256, %s952, [#allocation5], 128, 128, 8
        $region76: #{tpu_custom_call.1} parent=47 // pred_fallthru
          _
        // Predicated region
        $region77: #{tpu_custom_call.1} parent=47 // pred_check
          %p960 = pneg %p215
        $region78: #{tpu_custom_call.1} parent=47 // pred_check_branch
          %962 = sbr.rel (%p960) target = $region80
        $region79: #{tpu_custom_call.1} parent=47 // pred_region
          %963 = dma.done [#allocation5], 256
        $region80: #{tpu_custom_call.1} parent=47 // pred_fallthru
          _
      $region48: #{tpu_custom_call.1} parent=5 // pred_fallthru
        _
      %p964 = scmp.le.s32.totalorder 2, %s21
      // Predicated region
      $region81: #{tpu_custom_call.1} parent=5 // pred_check
        %p965 = pneg %p964
      $region82: #{tpu_custom_call.1} parent=5 // pred_check_branch
        %967 = sbr.rel (%p965) target = $region84
      $region83: #{tpu_custom_call.1} parent=5 // pred_region
        %s968 = ssub.s32 %s21, 2
      $region84: #{tpu_custom_call.1} parent=5 // pred_fallthru
        _
    $region6: #{tpu_custom_call.1} parent=1 // loop_footer
      %s25 = sadd.s32 1, %s21
    $region7: #{tpu_custom_call.1} parent=1 // loop_footer_branch
      %20 = sbr.rel target = $region3
    $region8: #{tpu_custom_call.1} parent=1 // loop_exit
      _
    %969 = vsyncpa [#allocation4], 1
    %s970 = scalar_lea.sflag [#allocation4], 1
    %971 = vsyncpa %s970, 1
    %972 = vsyncpa [#allocation7], 1
    %s973 = scalar_lea.sflag [#allocation7], 1
    %974 = vsyncpa %s973, 1
    %975 = vsyncpa [#allocation10], 1
    %976 = vsyncpa [#allocation5], 1
    %s977 = scalar_lea.sflag [#allocation5], 1
    %978 = vsyncpa %s977, 1

// kernel: tpu_custom_call.1
$region0: #{tpu_custom_call.1}
  #allocation0 [shape = 'u32[]', space=smem, size = 0x4, offset = 0x4, fixed_abs, tag = 'smem constant byte address 0x4 - core index']
  #allocation1 [shape = 'u32[144,128]{1,0:T(1,128)}', space=vmem, size = 0x12000, scoped, tag = 'internal scratch']
  #allocation2 [shape = 'f32[16,128]{1,0:T(8,128)}', space=vmem, size = 0x2000, scoped, tag = 'scratch operand']
  %s0 = inlined_call_operand.hbm [shape: bf16[16,768], index: 0, kind: input, shape index: {}]
  %s1 = inlined_call_operand.hbm [shape: bf16[768,128], index: 1, kind: input, shape index: {}]
  %s2 = inlined_call_operand.vmem [shape: f32[1,128], index: 2, kind: input, shape index: {}]
  %s3 = inlined_call_operand.hbm [shape: bf16[128,128], index: 3, kind: input, shape index: {}]
  %s4 = inlined_call_operand.vmem [shape: f32[1,128], index: 4, kind: input, shape index: {}]
  %s5 = inlined_call_operand.hbm [shape: bf16[128,128], index: 5, kind: input, shape index: {}]
  %s6 = inlined_call_operand.vmem [shape: f32[1,128], index: 6, kind: input, shape index: {}]
  %s7 = inlined_call_operand.hbm [shape: f32[16,128], index: 7, kind: output, shape index: {}]
  %s8 = sld [smem:[#allocation0]]
  $region85: #{tpu_custom_call.1} parent=0
    _
  %s10 = ssub.s32 1, %s8
  %s11 = scalar_select 0, %s10, %s8
  $region1: #{tpu_custom_call.1} parent=0
    #allocation3 [shape = 'u8[24576]{0}', space=vmem, size = 0x6000, scoped, tag = 'input window, operand 0']
    #allocation4 [shape = 's32[2]{0}', space=sflag, size = 0x8, scoped, tag = 'scoped memory for tpu_custom_call.1']
    #allocation5 [shape = 's32[2]{0}', space=sflag, size = 0x8, scoped, tag = 'scoped memory for tpu_custom_call.1']
    #allocation6 [shape = 'u8[196608]{0}', space=vmem, size = 0x30000, scoped, tag = 'input window, operand 1']
    #allocation7 [shape = 's32[2]{0}', space=sflag, size = 0x8, scoped, tag = 'scoped memory for tpu_custom_call.1']
    #allocation8 [shape = 'u8[32768]{0}', space=vmem, size = 0x8000, scoped, tag = 'input window, operand 3, single buffered']
    #allocation9 [shape = 'u8[32768]{0}', space=vmem, size = 0x8000, scoped, tag = 'input window, operand 5, single buffered']
    #allocation10 [shape = 's32[1]{0}', space=sflag, size = 0x4, scoped, tag = 'scoped memory for tpu_custom_call.1']
    #allocation11 [shape = 'u8[8192]{0}', space=vmem, size = 0x2000, scoped, tag = 'output window, operand 0, single buffered']
    %12 = vsyncpa [#allocation4], 0
    %s13 = scalar_lea.sflag [#allocation4], 1
    %14 = vsyncpa %s13, 0
    %15 = vsyncpa [#allocation7], 0
    %s16 = scalar_lea.sflag [#allocation7], 1
    %17 = vsyncpa %s16, 0
    %18 = vsyncpa [#allocation10], 0
    %19 = vsyncpa [#allocation5], 0
    loop: start=0, step=1, limit=4
    $region2: #{tpu_custom_call.1} parent=1 // loop_pre_header
      _
    $region3: #{tpu_custom_call.1} parent=1 // loop_header
      %s21 = sphi 0, %s25
      %p22 = scmp.ge.s32.totalorder %s21, 4
      %s28 = sphi 0, %s40
      %s29 = sphi 0, %s36
      %s30 = sphi 0, %s28
      %s31 = sphi 0, %s29
      %s32 = sphi 0, %s30
      %s33 = sphi 0, %s31
      %s45 = sphi 0, %s47
      %s48 = sphi 0, %s45
      %s49 = sphi 0, %s48
      %s65 = sphi 0, %s49
      %s71 = sphi 0, %s73
      %s74 = sphi 0, %s71
      %s75 = sphi 0, %s74
      %s91 = sphi 0, %s75
      %s95 = sphi 0, %s95
      %s97 = sphi 0, %s95
      %s98 = sphi 0, %s97
      %s112 = sphi 0, %s98
      %s116 = sphi 0, %s116
      %s118 = sphi 0, %s116
      %s119 = sphi 0, %s118
      %s133 = sphi 0, %s119
      %s137 = sphi 0, %s137
      %s139 = sphi 0, %s137
      %s140 = sphi 0, %s139
      %s154 = sphi 0, %s140
      %s158 = sphi 0, %s158
      %s160 = sphi 0, %s158
      %s161 = sphi 0, %s160
      %s175 = sphi 0, %s161
      %s179 = sphi 0, %s179
      %s181 = sphi 0, %s179
      %s182 = sphi 0, %s181
      %s196 = sphi 0, %s182
      %s202 = sphi 0, %s204
      %s205 = sphi 0, %s202
      %s206 = sphi 0, %s205
      %s222 = sphi 0, %s206
    $region4: #{tpu_custom_call.1} parent=1 // loop_header_branch
      %24 = sbr.rel (%p22) target = $region8
    $region5: #{tpu_custom_call.1} parent=1 // loop_body
      %s26 = ssub.s32 %s21, 1
      %s27 = ssub.s32 %s21, 2
      %s34 = sadd.s32 1, %s29
      %p35 = scmp.ge.s32.totalorder %s34, 2
      %s36 = scalar_select %p35, 0, %s34
      %s37 = sadd.s32 1, %s28
      %s38 = scalar_select %p35, %s37, %s28
      %p39 = scmp.ge.s32.totalorder %s38, 1
      %s40 = scalar_select %p39, 0, %s38
      %s41 = ssub.s32 %s28, %s40
      %s42 = ssub.s32 %s29, %s36
      %s43 = sor.u32 %s41, %s42
      %p44 = scmp.eq.s32.totalorder %s43, 0
      %s46 = sadd.s32 %s45, 1
      %s47 = scalar_select %p44, %s45, %s46
      %p50 = pneg %p44
      %p51 = scmp.eq.s32.totalorder %s21, 1
      %p52 = por %p50, %p51
      %p53 = scmp.ne.s32.totalorder %s45, %s48
      %p54 = scmp.eq.s32.totalorder %s21, 0
      %p55 = por %p53, %p54
      %p56 = scmp.ne.s32.totalorder %s45, %s48
      %p57 = scmp.eq.s32.totalorder %s26, 1
      %p58 = por %p56, %p57
      %p59 = scmp.ne.s32.totalorder %s48, %s49
      %p60 = scmp.eq.s32.totalorder %s26, 0
      %p61 = por %p59, %p60
      %p62 = scmp.ne.s32.totalorder %s48, %s49
      %p63 = scmp.eq.s32.totalorder %s27, 1
      %p64 = por %p62, %p63
      %p66 = scmp.ne.s32.totalorder %s49, %s65
      %p67 = scmp.eq.s32.totalorder %s27, 0
      %p68 = por %p66, %p67
      %s69 = ssub.s32 %s29, %s36
      %p70 = scmp.eq.s32.totalorder %s69, 0
      %s72 = sadd.s32 %s71, 1
      %s73 = scalar_select %p70, %s71, %s72
      %p76 = pneg %p70
      %p77 = scmp.eq.s32.totalorder %s21, 1
      %p78 = por %p76, %p77
      %p79 = scmp.ne.s32.totalorder %s71, %s74
      %p80 = scmp.eq.s32.totalorder %s21, 0
      %p81 = por %p79, %p80
      %p82 = scmp.ne.s32.totalorder %s71, %s74
      %p83 = scmp.eq.s32.totalorder %s26, 1
      %p84 = por %p82, %p83
      %p85 = scmp.ne.s32.totalorder %s74, %s75
      %p86 = scmp.eq.s32.totalorder %s26, 0
      %p87 = por %p85, %p86
      %p88 = scmp.ne.s32.totalorder %s74, %s75
      %p89 = scmp.eq.s32.totalorder %s27, 1
      %p90 = por %p88, %p89
      %p92 = scmp.ne.s32.totalorder %s75, %s91
      %p93 = scmp.eq.s32.totalorder %s27, 0
      %p94 = por %p92, %p93
      %s96 = sadd.s32 %s95, 1
      %p99 = scmp.eq.s32.totalorder %s21, 1
      %p100 = scmp.ne.s32.totalorder %s95, %s97
      %p101 = scmp.eq.s32.totalorder %s21, 0
      %p102 = por %p100, %p101
      %p103 = scmp.ne.s32.totalorder %s95, %s97
      %p104 = scmp.eq.s32.totalorder %s26, 1
      %p105 = por %p103, %p104
      %p106 = scmp.ne.s32.totalorder %s97, %s98
      %p107 = scmp.eq.s32.totalorder %s26, 0
      %p108 = por %p106, %p107
      %p109 = scmp.ne.s32.totalorder %s97, %s98
      %p110 = scmp.eq.s32.totalorder %s27, 1
      %p111 = por %p109, %p110
      %p113 = scmp.ne.s32.totalorder %s98, %s112
      %p114 = scmp.eq.s32.totalorder %s27, 0
      %p115 = por %p113, %p114
      %s117 = sadd.s32 %s116, 1
      %p120 = scmp.eq.s32.totalorder %s21, 1
      %p121 = scmp.ne.s32.totalorder %s116, %s118
      %p122 = scmp.eq.s32.totalorder %s21, 0
      %p123 = por %p121, %p122
      %p124 = scmp.ne.s32.totalorder %s116, %s118
      %p125 = scmp.eq.s32.totalorder %s26, 1
      %p126 = por %p124, %p125
      %p127 = scmp.ne.s32.totalorder %s118, %s119
      %p128 = scmp.eq.s32.totalorder %s26, 0
      %p129 = por %p127, %p128
      %p130 = scmp.ne.s32.totalorder %s118, %s119
      %p131 = scmp.eq.s32.totalorder %s27, 1
      %p132 = por %p130, %p131
      %p134 = scmp.ne.s32.totalorder %s119, %s133
      %p135 = scmp.eq.s32.totalorder %s27, 0
      %p136 = por %p134, %p135
      %s138 = sadd.s32 %s137, 1
      %p141 = scmp.eq.s32.totalorder %s21, 1
      %p142 = scmp.ne.s32.totalorder %s137, %s139
      %p143 = scmp.eq.s32.totalorder %s21, 0
      %p144 = por %p142, %p143
      %p145 = scmp.ne.s32.totalorder %s137, %s139
      %p146 = scmp.eq.s32.totalorder %s26, 1
      %p147 = por %p145, %p146
      %p148 = scmp.ne.s32.totalorder %s139, %s140
      %p149 = scmp.eq.s32.totalorder %s26, 0
      %p150 = por %p148, %p149
      %p151 = scmp.ne.s32.totalorder %s139, %s140
      %p152 = scmp.eq.s32.totalorder %s27, 1
      %p153 = por %p151, %p152
      %p155 = scmp.ne.s32.totalorder %s140, %s154
      %p156 = scmp.eq.s32.totalorder %s27, 0
      %p157 = por %p155, %p156
      %s159 = sadd.s32 %s158, 1
      %p162 = scmp.eq.s32.totalorder %s21, 1
      %p163 = scmp.ne.s32.totalorder %s158, %s160
      %p164 = scmp.eq.s32.totalorder %s21, 0
      %p165 = por %p163, %p164
      %p166 = scmp.ne.s32.totalorder %s158, %s160
      %p167 = scmp.eq.s32.totalorder %s26, 1
      %p168 = por %p166, %p167
      %p169 = scmp.ne.s32.totalorder %s160, %s161
      %p170 = scmp.eq.s32.totalorder %s26, 0
      %p171 = por %p169, %p170
      %p172 = scmp.ne.s32.totalorder %s160, %s161
      %p173 = scmp.eq.s32.totalorder %s27, 1
      %p174 = por %p172, %p173
      %p176 = scmp.ne.s32.totalorder %s161, %s175
      %p177 = scmp.eq.s32.totalorder %s27, 0
      %p178 = por %p176, %p177
      %s180 = sadd.s32 %s179, 1
      %p183 = scmp.eq.s32.totalorder %s21, 1
      %p184 = scmp.ne.s32.totalorder %s179, %s181
      %p185 = scmp.eq.s32.totalorder %s21, 0
      %p186 = por %p184, %p185
      %p187 = scmp.ne.s32.totalorder %s179, %s181
      %p188 = scmp.eq.s32.totalorder %s26, 1
      %p189 = por %p187, %p188
      %p190 = scmp.ne.s32.totalorder %s181, %s182
      %p191 = scmp.eq.s32.totalorder %s26, 0
      %p192 = por %p190, %p191
      %p193 = scmp.ne.s32.totalorder %s181, %s182
      %p194 = scmp.eq.s32.totalorder %s27, 1
      %p195 = por %p193, %p194
      %p197 = scmp.ne.s32.totalorder %s182, %s196
      %p198 = scmp.eq.s32.totalorder %s27, 0
      %p199 = por %p197, %p198
      %s200 = ssub.s32 %s28, %s40
      %p201 = scmp.eq.s32.totalorder %s200, 0
      %s203 = sadd.s32 %s202, 1
      %s204 = scalar_select %p201, %s202, %s203
      %p207 = pneg %p201
      %p208 = scmp.eq.s32.totalorder %s21, 1
      %p209 = por %p207, %p208
      %p210 = scmp.ne.s32.totalorder %s202, %s205
      %p211 = scmp.eq.s32.totalorder %s21, 0
      %p212 = por %p210, %p211
      %p213 = scmp.ne.s32.totalorder %s202, %s205
      %p214 = scmp.eq.s32.totalorder %s26, 1
      %p215 = por %p213, %p214
      %p216 = scmp.ne.s32.totalorder %s205, %s206
      %p217 = scmp.eq.s32.totalorder %s26, 0
      %p218 = por %p216, %p217
      %p219 = scmp.ne.s32.totalorder %s205, %s206
      %p220 = scmp.eq.s32.totalorder %s27, 1
      %p221 = por %p219, %p220
      %p223 = scmp.ne.s32.totalorder %s206, %s222
      %p224 = scmp.eq.s32.totalorder %s27, 0
      %p225 = por %p223, %p224
      %p226 = scmp.le.s32.totalorder 1, %s21
      %p227 = scmp.lt.s32.totalorder %s21, 3
      %p228 = pnand %p226, %p227
      %p229 = pneg %p228
      // Predicated region
      $region9: #{tpu_custom_call.1} parent=5 // pred_check
        _
      $region10: #{tpu_custom_call.1} parent=5 // pred_check_branch
        %231 = sbr.rel (%p228) target = $region12
      $region11: #{tpu_custom_call.1} parent=5 // pred_region
        %s232 = ssub.s32 %s21, 1
        // Predicated region
        $region13: #{tpu_custom_call.1} parent=11 // pred_check
          %p233 = pneg %p108
        $region14: #{tpu_custom_call.1} parent=11 // pred_check_branch
          %235 = sbr.rel (%p233) target = $region16
        $region15: #{tpu_custom_call.1} parent=11 // pred_region
          _
        $region16: #{tpu_custom_call.1} parent=11 // pred_fallthru
          _
        // Predicated region
        $region17: #{tpu_custom_call.1} parent=11 // pred_check
          %p236 = pneg %p129
        $region18: #{tpu_custom_call.1} parent=11 // pred_check_branch
          %238 = sbr.rel (%p236) target = $region20
        $region19: #{tpu_custom_call.1} parent=11 // pred_region
          %s240 = ssub.s32 1024, 1024
          %241 = vsyncadd [#allocation7], %s240
          %s242 = sshll.u32 [#allocation8], 4
          %s243 = int_to_ptr.vmem [resolvable:$true] %s242
          %248 = dma.hbm_to_vmem [thread:$0]  %s3, 1024, %s243, [#allocation7], 64, 64, 4
        $region20: #{tpu_custom_call.1} parent=11 // pred_fallthru
          _
        // Predicated region
        $region21: #{tpu_custom_call.1} parent=11 // pred_check
          %p249 = pneg %p150
        $region22: #{tpu_custom_call.1} parent=11 // pred_check_branch
          %251 = sbr.rel (%p249) target = $region24
        $region23: #{tpu_custom_call.1} parent=11 // pred_region
          _
        $region24: #{tpu_custom_call.1} parent=11 // pred_fallthru
          _
        // Predicated region
        $region25: #{tpu_custom_call.1} parent=11 // pred_check
          %p252 = pneg %p171
        $region26: #{tpu_custom_call.1} parent=11 // pred_check_branch
          %254 = sbr.rel (%p252) target = $region28
        $region27: #{tpu_custom_call.1} parent=11 // pred_region
          %s256 = ssub.s32 1024, 1024
          %257 = vsyncadd [#allocation10], %s256
          %s258 = sshll.u32 [#allocation9], 4
          %s259 = int_to_ptr.vmem [resolvable:$true] %s258
          %264 = dma.hbm_to_vmem [thread:$0]  %s5, 1024, %s259, [#allocation10], 64, 64, 4
        $region28: #{tpu_custom_call.1} parent=11 // pred_fallthru
          _
        // Predicated region
        $region29: #{tpu_custom_call.1} parent=11 // pred_check
          %p265 = pneg %p192
        $region30: #{tpu_custom_call.1} parent=11 // pred_check_branch
          %267 = sbr.rel (%p265) target = $region32
        $region31: #{tpu_custom_call.1} parent=11 // pred_region
          _
        $region32: #{tpu_custom_call.1} parent=11 // pred_fallthru
          _
      $region12: #{tpu_custom_call.1} parent=5 // pred_fallthru
        _
      %p268 = scmp.lt.s32.totalorder %s21, 2
      // Predicated region
      $region33: #{tpu_custom_call.1} parent=5 // pred_check
        %p269 = pneg %p268
      $region34: #{tpu_custom_call.1} parent=5 // pred_check_branch
        %271 = sbr.rel (%p269) target = $region36
      $region35: #{tpu_custom_call.1} parent=5 // pred_region
        // Predicated region
        $region37: #{tpu_custom_call.1} parent=35 // pred_check
          %p272 = pneg %p55
        $region38: #{tpu_custom_call.1} parent=35 // pred_check_branch
          %274 = sbr.rel (%p272) target = $region40
        $region39: #{tpu_custom_call.1} parent=35 // pred_region
          %s275 = sand.u32 %s45, 1
          %s276 = scalar_lea.sflag [#allocation4], %s275
          %s277 = sand.u32 %s45, 1
          %s278 = smul.addr %s277, 24
          %s279 = scalar_lea.vmem [#allocation3], %s278
          %s280 = smul.u32 2, %s28
          %s281 = smul.u32 3, %s29
          %s283 = ssub.s32 384, 384
          %284 = vsyncadd %s276, %s283
          %s285 = smul.addr %s280, 6
          %s286 = sadd.s32 %s281, %s285
          %s287 = smul.addr %s286, 64
          %s288 = scalar_lea.hbm %s0, %s287
          %s289 = sshll.u32 %s279, 4
          %s290 = int_to_ptr.vmem [resolvable:$true] %s289
          %295 = dma.hbm_to_vmem [thread:$0]  %s288, 384, %s290, %s276, 384, 192, 12
        $region40: #{tpu_custom_call.1} parent=35 // pred_fallthru
          _
        // Predicated region
        $region41: #{tpu_custom_call.1} parent=35 // pred_check
          %p296 = pneg %p81
        $region42: #{tpu_custom_call.1} parent=35 // pred_check_branch
          %298 = sbr.rel (%p296) target = $region44
        $region43: #{tpu_custom_call.1} parent=35 // pred_region
          %s299 = sand.u32 %s21, 1
          %s300 = scalar_lea.sflag [#allocation7], %s299
          %s301 = sand.u32 %s71, 1
          %s302 = smul.addr %s301, 192
          %s303 = scalar_lea.vmem [#allocation6], %s302
          %s304 = smul.u32 48, %s29
          %s306 = ssub.s32 3072, 3072
          %307 = vsyncadd %s300, %s306
          %s308 = smul.addr %s304, 64
          %s309 = scalar_lea.hbm %s1, %s308
          %s310 = sshll.u32 %s303, 4
          %s311 = int_to_ptr.vmem [resolvable:$true] %s310
          %316 = dma.hbm_to_vmem [thread:$0]  %s309, 3072, %s311, %s300, 64, 64, 4
        $region44: #{tpu_custom_call.1} parent=35 // pred_fallthru
          _
      $region36: #{tpu_custom_call.1} parent=5 // pred_fallthru
        _
      %p317 = scmp.le.s32.totalorder 1, %s21
      %p318 = scmp.lt.s32.totalorder %s21, 3
      %p319 = pnand %p317, %p318
      %p320 = pneg %p319
      // Predicated region
      $region45: #{tpu_custom_call.1} parent=5 // pred_check
        _
      $region46: #{tpu_custom_call.1} parent=5 // pred_check_branch
        %322 = sbr.rel (%p319) target = $region48
      $region47: #{tpu_custom_call.1} parent=5 // pred_region
        %s323 = ssub.s32 %s21, 1
        %s324 = sand.u32 %s48, 1
        %s325 = scalar_lea.sflag [#allocation4], %s324
        %s326 = sand.u32 %s48, 1
        %s327 = smul.addr %s326, 24
        %s328 = scalar_lea.vmem [#allocation3], %s327
        // Predicated region
        $region49: #{tpu_custom_call.1} parent=47 // pred_check
          %p329 = pneg %p61
        $region50: #{tpu_custom_call.1} parent=47 // pred_check_branch
          %331 = sbr.rel (%p329) target = $region52
        $region51: #{tpu_custom_call.1} parent=47 // pred_region
          %332 = dma.done %s325, 384
        $region52: #{tpu_custom_call.1} parent=47 // pred_fallthru
          _
        %s333 = sand.u32 %s26, 1
        %s334 = scalar_lea.sflag [#allocation7], %s333
        %s335 = sand.u32 %s74, 1
        %s336 = smul.addr %s335, 192
        %s337 = scalar_lea.vmem [#allocation6], %s336
        // Predicated region
        $region53: #{tpu_custom_call.1} parent=47 // pred_check
          %p338 = pneg %p87
        $region54: #{tpu_custom_call.1} parent=47 // pred_check_branch
          %340 = sbr.rel (%p338) target = $region56
        $region55: #{tpu_custom_call.1} parent=47 // pred_region
          %341 = dma.done %s334, 3072
        $region56: #{tpu_custom_call.1} parent=47 // pred_fallthru
          _
        // Predicated region
        $region57: #{tpu_custom_call.1} parent=47 // pred_check
          %p342 = pneg %p129
        $region58: #{tpu_custom_call.1} parent=47 // pred_check_branch
          %344 = sbr.rel (%p342) target = $region60
        $region59: #{tpu_custom_call.1} parent=47 // pred_region
          %345 = dma.done [#allocation7], 1024
        $region60: #{tpu_custom_call.1} parent=47 // pred_fallthru
          _
        // Predicated region
        $region61: #{tpu_custom_call.1} parent=47 // pred_check
          %p346 = pneg %p171
        $region62: #{tpu_custom_call.1} parent=47 // pred_check_branch
          %348 = sbr.rel (%p346) target = $region64
        $region63: #{tpu_custom_call.1} parent=47 // pred_region
          %349 = dma.done [#allocation10], 1024
        $region64: #{tpu_custom_call.1} parent=47 // pred_fallthru
          _
        %s350 = sand.u32 %s48, 1
        %s351 = scalar_lea.sflag [#allocation4], %s350
        %s352 = sand.u32 %s48, 1
        %s353 = smul.addr %s352, 24
        %s354 = scalar_lea.vmem [#allocation3], %s353
        %p355 = pneg %p61
        %p356 = pneg %p58
        %s357 = sand.u32 %s26, 1
        %s358 = scalar_lea.sflag [#allocation7], %s357
        %s359 = sand.u32 %s74, 1
        %s360 = smul.addr %s359, 192
        %s361 = scalar_lea.vmem [#allocation6], %s360
        %p362 = pneg %p87
        %p363 = pneg %p84
        %p364 = pneg %p108
        %p365 = pneg %p105
        %p366 = pneg %p129
        %p367 = pneg %p126
        %p368 = pneg %p150
        %p369 = pneg %p147
        %p370 = pneg %p171
        %p371 = pneg %p168
        %p372 = pneg %p192
        %p373 = pneg %p189
        %p374 = pneg %p218
        %p375 = pneg %p215
        %s376 = smul.u32 2, %s30
        %s377 = smul.u32 3, %s31
        %s378 = smul.u32 48, %s31
        %s379 = smul.u32 2, %s30
        %p381 = scmp.eq.s32.totalorder %s31, 0
        // Predicated region
        $region65: #{tpu_custom_call.1} parent=47 // pred_check
          %p382 = pneg %p381
        $region66: #{tpu_custom_call.1} parent=47 // pred_check_branch
          %384 = sbr.rel (%p382) target = $region68
        $region67: #{tpu_custom_call.1} parent=47 // pred_region
          %385 = vst [vmem:[#allocation2] sm:$0xff] 0.0
          %386 = vst [vmem:[#allocation2 + $0x8] sm:$0xff] 0.0
        $region68: #{tpu_custom_call.1} parent=47 // pred_fallthru
          _
        %v387 = vld [vmem:[#allocation2] sm:$0xff]
        %v388 = vld [vmem:[#allocation2 + $0x8] sm:$0xff]
        %v389 = vld [vmem:[%s328] sm:$0xff]
        %v390 = vld [vmem:[%s328 + $0x8] sm:$0xf]
        %v391 = vld [vmem:[%s328 + $0xc] sm:$0xff]
        %v392 = vld [vmem:[%s328 + $0x14] sm:$0xf]
        %v393 = vld [vmem:[%s337] sm:$0xf]
        %v394 = vld [vmem:[%s337 + $0x4] sm:$0xf]
        %v395 = vld [vmem:[%s337 + $0x8] sm:$0xf]
        %v396 = vld [vmem:[%s337 + $0xc] sm:$0xf]
        %v397 = vld [vmem:[%s337 + $0x10] sm:$0xf]
        %v398 = vld [vmem:[%s337 + $0x14] sm:$0xf]
        %v399 = vld [vmem:[%s337 + $0x18] sm:$0xf]
        %v400 = vld [vmem:[%s337 + $0x1c] sm:$0xf]
        %v401 = vld [vmem:[%s337 + $0x20] sm:$0xf]
        %v402 = vld [vmem:[%s337 + $0x24] sm:$0xf]
        %v403 = vld [vmem:[%s337 + $0x28] sm:$0xf]
        %v404 = vld [vmem:[%s337 + $0x2c] sm:$0xf]
        %v405 = vld [vmem:[%s337 + $0x30] sm:$0xf]
        %v406 = vld [vmem:[%s337 + $0x34] sm:$0xf]
        %v407 = vld [vmem:[%s337 + $0x38] sm:$0xf]
        %v408 = vld [vmem:[%s337 + $0x3c] sm:$0xf]
        %v409 = vld [vmem:[%s337 + $0x40] sm:$0xf]
        %v410 = vld [vmem:[%s337 + $0x44] sm:$0xf]
        %v411 = vld [vmem:[%s337 + $0x48] sm:$0xf]
        %v412 = vld [vmem:[%s337 + $0x4c] sm:$0xf]
        %v413 = vld [vmem:[%s337 + $0x50] sm:$0xf]
        %v414 = vld [vmem:[%s337 + $0x54] sm:$0xf]
        %v415 = vld [vmem:[%s337 + $0x58] sm:$0xf]
        %v416 = vld [vmem:[%s337 + $0x5c] sm:$0xf]
        %v417 = vld [vmem:[%s337 + $0x60] sm:$0xf]
        %v418 = vld [vmem:[%s337 + $0x64] sm:$0xf]
        %v419 = vld [vmem:[%s337 + $0x68] sm:$0xf]
        %v420 = vld [vmem:[%s337 + $0x6c] sm:$0xf]
        %v421 = vld [vmem:[%s337 + $0x70] sm:$0xf]
        %v422 = vld [vmem:[%s337 + $0x74] sm:$0xf]
        %v423 = vld [vmem:[%s337 + $0x78] sm:$0xf]
        %v424 = vld [vmem:[%s337 + $0x7c] sm:$0xf]
        %v425 = vld [vmem:[%s337 + $0x80] sm:$0xf]
        %v426 = vld [vmem:[%s337 + $0x84] sm:$0xf]
        %v427 = vld [vmem:[%s337 + $0x88] sm:$0xf]
        %v428 = vld [vmem:[%s337 + $0x8c] sm:$0xf]
        %v429 = vld [vmem:[%s337 + $0x90] sm:$0xf]
        %v430 = vld [vmem:[%s337 + $0x94] sm:$0xf]
        %v431 = vld [vmem:[%s337 + $0x98] sm:$0xf]
        %v432 = vld [vmem:[%s337 + $0x9c] sm:$0xf]
        %v433 = vld [vmem:[%s337 + $0xa0] sm:$0xf]
        %v434 = vld [vmem:[%s337 + $0xa4] sm:$0xf]
        %v435 = vld [vmem:[%s337 + $0xa8] sm:$0xf]
        %v436 = vld [vmem:[%s337 + $0xac] sm:$0xf]
        %v437 = vld [vmem:[%s337 + $0xb0] sm:$0xf]
        %v438 = vld [vmem:[%s337 + $0xb4] sm:$0xf]
        %v439 = vld [vmem:[%s337 + $0xb8] sm:$0xf]
        %v440 = vld [vmem:[%s337 + $0xbc] sm:$0xf]
        %v445 = vunpack.c.l.b16 %v389
        %v446 = vunpack.c.h.b16 %v389
        %v447 = vunpack.c.l.b16 %v390
        %v448 = vunpack.c.l.b16 %v391
        %v449 = vunpack.c.h.b16 %v391
        %v450 = vunpack.c.l.b16 %v392
        %v451 = vpack.c.b16 %v448, %v445
        %v452 = vpack.c.b16 %v449, %v446
        %v453 = vpack.c.b16 %v450, %v447
        %v505 = vunpack.c.l.b16 %v393
        %v506 = vunpack.c.l.b16 %v394
        %v507 = vunpack.c.l.b16 %v395
        %v508 = vunpack.c.l.b16 %v396
        %v509 = vunpack.c.l.b16 %v397
        %v510 = vunpack.c.l.b16 %v398
        %v511 = vunpack.c.l.b16 %v399
        %v512 = vunpack.c.l.b16 %v400
        %v513 = vunpack.c.l.b16 %v401
        %v514 = vunpack.c.l.b16 %v402
        %v515 = vunpack.c.l.b16 %v403
        %v516 = vunpack.c.l.b16 %v404
        %v517 = vunpack.c.l.b16 %v405
        %v518 = vunpack.c.l.b16 %v406
        %v519 = vunpack.c.l.b16 %v407
        %v520 = vunpack.c.l.b16 %v408
        %v521 = vunpack.c.l.b16 %v409
        %v522 = vunpack.c.l.b16 %v410
        %v523 = vunpack.c.l.b16 %v411
        %v524 = vunpack.c.l.b16 %v412
        %v525 = vunpack.c.l.b16 %v413
        %v526 = vunpack.c.l.b16 %v414
        %v527 = vunpack.c.l.b16 %v415
        %v528 = vunpack.c.l.b16 %v416
        %v529 = vunpack.c.l.b16 %v417
        %v530 = vunpack.c.l.b16 %v418
        %v531 = vunpack.c.l.b16 %v419
        %v532 = vunpack.c.l.b16 %v420
        %v533 = vunpack.c.l.b16 %v421
        %v534 = vunpack.c.l.b16 %v422
        %v535 = vunpack.c.l.b16 %v423
        %v536 = vunpack.c.l.b16 %v424
        %v537 = vunpack.c.l.b16 %v425
        %v538 = vunpack.c.l.b16 %v426
        %v539 = vunpack.c.l.b16 %v427
        %v540 = vunpack.c.l.b16 %v428
        %v541 = vunpack.c.l.b16 %v429
        %v542 = vunpack.c.l.b16 %v430
        %v543 = vunpack.c.l.b16 %v431
        %v544 = vunpack.c.l.b16 %v432
        %v545 = vunpack.c.l.b16 %v433
        %v546 = vunpack.c.l.b16 %v434
        %v547 = vunpack.c.l.b16 %v435
        %v548 = vunpack.c.l.b16 %v436
        %v549 = vunpack.c.l.b16 %v437
        %v550 = vunpack.c.l.b16 %v438
        %v551 = vunpack.c.l.b16 %v439
        %v552 = vunpack.c.l.b16 %v440
        %v553 = vpack.c.b16 %v506, %v505
        %v554 = vpack.c.b16 %v508, %v507
        %v555 = vpack.c.b16 %v510, %v509
        %v556 = vpack.c.b16 %v512, %v511
        %v557 = vpack.c.b16 %v514, %v513
        %v558 = vpack.c.b16 %v516, %v515
        %v559 = vpack.c.b16 %v518, %v517
        %v560 = vpack.c.b16 %v520, %v519
        %v561 = vpack.c.b16 %v522, %v521
        %v562 = vpack.c.b16 %v524, %v523
        %v563 = vpack.c.b16 %v526, %v525
        %v564 = vpack.c.b16 %v528, %v527
        %v565 = vpack.c.b16 %v530, %v529
        %v566 = vpack.c.b16 %v532, %v531
        %v567 = vpack.c.b16 %v534, %v533
        %v568 = vpack.c.b16 %v536, %v535
        %v569 = vpack.c.b16 %v538, %v537
        %v570 = vpack.c.b16 %v540, %v539
        %v571 = vpack.c.b16 %v542, %v541
        %v572 = vpack.c.b16 %v544, %v543
        %v573 = vpack.c.b16 %v546, %v545
        %v574 = vpack.c.b16 %v548, %v547
        %v575 = vpack.c.b16 %v550, %v549
        %v576 = vpack.c.b16 %v552, %v551
        %601 = vmatprep.subr.bf16.mxu0 0
        %602 = vmatpush1.bf16.msra.mxu0 %v553
        %603 = vmatprep.subr.bf16.mxu0 0
        %604 = vmatpush1.bf16.msra.mxu0 %v554
        %605 = vmatprep.subr.bf16.mxu0 0
        %606 = vmatpush1.bf16.msra.mxu0 %v555
        %607 = vmatprep.subr.bf16.mxu0 0
        %608 = vmatpush1.bf16.msra.mxu0 %v556
        %609 = vmatprep.subr.bf16.mxu0 0
        %610 = vmatpush1.bf16.msra.mxu0 %v557
        %611 = vmatprep.subr.bf16.mxu0 0
        %612 = vmatpush1.bf16.msra.mxu0 %v558
        %613 = vmatprep.subr.bf16.mxu0 0
        %614 = vmatpush1.bf16.msra.mxu0 %v559
        %615 = vmatprep.subr.bf16.mxu0 0
        %616 = vmatpush1.bf16.msra.mxu0 %v560
        %617 = vmatprep.subr.bf16.mxu0 0
        %618 = vmatpush1.bf16.msra.mxu0 %v561
        %619 = vmatprep.subr.bf16.mxu0 0
        %620 = vmatpush1.bf16.msra.mxu0 %v562
        %621 = vmatprep.subr.bf16.mxu0 0
        %622 = vmatpush1.bf16.msra.mxu0 %v563
        %623 = vmatprep.subr.bf16.mxu0 0
        %624 = vmatpush1.bf16.msra.mxu0 %v564
        %625 = vmatprep.subr.bf16.mxu0 0
        %626 = vmatpush1.bf16.msra.mxu0 %v565
        %627 = vmatprep.subr.bf16.mxu0 0
        %628 = vmatpush1.bf16.msra.mxu0 %v566
        %629 = vmatprep.subr.bf16.mxu0 0
        %630 = vmatpush1.bf16.msra.mxu0 %v567
        %631 = vmatprep.subr.bf16.mxu0 0
        %632 = vmatpush1.bf16.msra.mxu0 %v568
        %633 = vmatprep.mubr.bf16.mxu0 %v452
        %634 = vmatmul.mubr.bf16.gmra.mrb[0].mxu0 %v451
        %v635 = vpop.f32.mrb[0].mxu0
        %v636 = vadd.f32 0.0, %v635
        %v637 = vpop.f32.mrb[0].mxu0
        %v638 = vpop.f32.mrb[0].mxu0
        %v639 = vadd.f32 0.0, %v638
        %v640 = vpop.f32.mrb[0].mxu0
        %641 = vdwg.mxu0
        %642 = vmatprep.subr.bf16.mxu0 0
        %643 = vmatpush1.bf16.msra.mxu0 %v569
        %644 = vmatprep.subr.bf16.mxu0 0
        %645 = vmatpush1.bf16.msra.mxu0 %v570
        %646 = vmatprep.subr.bf16.mxu0 0
        %647 = vmatpush1.bf16.msra.mxu0 %v571
        %648 = vmatprep.subr.bf16.mxu0 0
        %649 = vmatpush1.bf16.msra.mxu0 %v572
        %650 = vmatprep.subr.bf16.mxu0 0
        %651 = vmatpush1.bf16.msra.mxu0 %v573
        %652 = vmatprep.subr.bf16.mxu0 0
        %653 = vmatpush1.bf16.msra.mxu0 %v574
        %654 = vmatprep.subr.bf16.mxu0 0
        %655 = vmatpush1.bf16.msra.mxu0 %v575
        %656 = vmatprep.subr.bf16.mxu0 0
        %657 = vmatpush1.bf16.msra.mxu0 %v576
        %658 = vmatprep.subr.bf16.mxu0 0
        %659 = vmatpush1.bf16.msra.mxu0 0
        %660 = vmatprep.subr.bf16.mxu0 0
        %661 = vmatpush1.bf16.msra.mxu0 0
        %662 = vmatprep.subr.bf16.mxu0 0
        %663 = vmatpush1.bf16.msra.mxu0 0
        %664 = vmatprep.subr.bf16.mxu0 0
        %665 = vmatpush1.bf16.msra.mxu0 0
        %666 = vmatprep.subr.bf16.mxu0 0
        %667 = vmatpush1.bf16.msra.mxu0 0
        %668 = vmatprep.subr.bf16.mxu0 0
        %669 = vmatpush1.bf16.msra.mxu0 0
        %670 = vmatprep.subr.bf16.mxu0 0
        %671 = vmatpush1.bf16.msra.mxu0 0
        %672 = vmatprep.subr.bf16.mxu0 0
        %673 = vmatpush1.bf16.msra.mxu0 0
        %674 = vmatprep.mubr.bf16.mxu0 0
        %675 = vmatmul.mubr.bf16.gmra.mrb[0].mxu0 %v453
        %v676 = vpop.f32.mrb[0].mxu0
        %v677 = vadd.f32 %v636, %v676
        %v678 = vpop.f32.mrb[0].mxu0
        %v679 = vpop.f32.mrb[0].mxu0
        %v680 = vadd.f32 %v639, %v679
        %v681 = vpop.f32.mrb[0].mxu0
        %682 = vdwg.mxu0
        %v683 = vadd.f32 %v387, %v677
        %v684 = vadd.f32 %v388, %v680
        %685 = vst [vmem:[#allocation2] sm:$0xff] %v683
        %686 = vst [vmem:[#allocation2 + $0x8] sm:$0xff] %v684
        %p687 = scmp.eq.s32.totalorder %s31, 1
        // Predicated region
        $region69: #{tpu_custom_call.1} parent=47 // pred_check
          %p688 = pneg %p687
        $region70: #{tpu_custom_call.1} parent=47 // pred_check_branch
          %690 = sbr.rel (%p688) target = $region72
        $region71: #{tpu_custom_call.1} parent=47 // pred_region
          %v691 = vld [vmem:[#allocation2] sm:$0xff]
          %v692 = vld [vmem:[#allocation2 + $0x8] sm:$0xff]
          %v693 = vld [vmem:[%s2] sm:$0x1]
          %v695 = vlaneseq
          %v696 = vshrl.u32 %v695, 7
          %v697 = vsub.s32 0, %v696
          %v698 = vrot.slane %v693, %v697
          %v700 = vadd.f32 %v691, %v698
          %v701 = vadd.f32 %v692, %v698
          %v702 = vpack.c.bf16 %v701, %v700
          %v703 = vld [vmem:[#allocation8] sm:$0xf]
          %v704 = vld [vmem:[#allocation8 + $0x4] sm:$0xf]
          %v705 = vld [vmem:[#allocation8 + $0x8] sm:$0xf]
          %v706 = vld [vmem:[#allocation8 + $0xc] sm:$0xf]
          %v707 = vld [vmem:[#allocation8 + $0x10] sm:$0xf]
          %v708 = vld [vmem:[#allocation8 + $0x14] sm:$0xf]
          %v709 = vld [vmem:[#allocation8 + $0x18] sm:$0xf]
          %v710 = vld [vmem:[#allocation8 + $0x1c] sm:$0xf]
          %v711 = vld [vmem:[#allocation8 + $0x20] sm:$0xf]
          %v712 = vld [vmem:[#allocation8 + $0x24] sm:$0xf]
          %v713 = vld [vmem:[#allocation8 + $0x28] sm:$0xf]
          %v714 = vld [vmem:[#allocation8 + $0x2c] sm:$0xf]
          %v715 = vld [vmem:[#allocation8 + $0x30] sm:$0xf]
          %v716 = vld [vmem:[#allocation8 + $0x34] sm:$0xf]
          %v717 = vld [vmem:[#allocation8 + $0x38] sm:$0xf]
          %v718 = vld [vmem:[#allocation8 + $0x3c] sm:$0xf]
          %v719 = vld [vmem:[%s4] sm:$0x1]
          %v721 = vlaneseq
          %v722 = vshrl.u32 %v721, 7
          %v723 = vsub.s32 0, %v722
          %v724 = vrot.slane %v719, %v723
          %v742 = vunpack.c.l.b16 %v703
          %v743 = vunpack.c.l.b16 %v704
          %v744 = vunpack.c.l.b16 %v705
          %v745 = vunpack.c.l.b16 %v706
          %v746 = vunpack.c.l.b16 %v707
          %v747 = vunpack.c.l.b16 %v708
          %v748 = vunpack.c.l.b16 %v709
          %v749 = vunpack.c.l.b16 %v710
          %v750 = vunpack.c.l.b16 %v711
          %v751 = vunpack.c.l.b16 %v712
          %v752 = vunpack.c.l.b16 %v713
          %v753 = vunpack.c.l.b16 %v714
          %v754 = vunpack.c.l.b16 %v715
          %v755 = vunpack.c.l.b16 %v716
          %v756 = vunpack.c.l.b16 %v717
          %v757 = vunpack.c.l.b16 %v718
          %v758 = vpack.c.b16 %v743, %v742
          %v759 = vpack.c.b16 %v745, %v744
          %v760 = vpack.c.b16 %v747, %v746
          %v761 = vpack.c.b16 %v749, %v748
          %v762 = vpack.c.b16 %v751, %v750
          %v763 = vpack.c.b16 %v753, %v752
          %v764 = vpack.c.b16 %v755, %v754
          %v765 = vpack.c.b16 %v757, %v756
          %774 = vmatprep.subr.bf16.mxu0 0
          %775 = vmatpush1.bf16.msra.mxu0 %v758
          %776 = vmatprep.subr.bf16.mxu0 0
          %777 = vmatpush1.bf16.msra.mxu0 %v759
          %778 = vmatprep.subr.bf16.mxu0 0
          %779 = vmatpush1.bf16.msra.mxu0 %v760
          %780 = vmatprep.subr.bf16.mxu0 0
          %781 = vmatpush1.bf16.msra.mxu0 %v761
          %782 = vmatprep.subr.bf16.mxu0 0
          %783 = vmatpush1.bf16.msra.mxu0 %v762
          %784 = vmatprep.subr.bf16.mxu0 0
          %785 = vmatpush1.bf16.msra.mxu0 %v763
          %786 = vmatprep.subr.bf16.mxu0 0
          %787 = vmatpush1.bf16.msra.mxu0 %v764
          %788 = vmatprep.subr.bf16.mxu0 0
          %789 = vmatpush1.bf16.msra.mxu0 %v765
          %790 = vmatprep.subr.bf16.mxu0 0
          %791 = vmatpush1.bf16.msra.mxu0 0
          %792 = vmatprep.subr.bf16.mxu0 0
          %793 = vmatpush1.bf16.msra.mxu0 0
          %794 = vmatprep.subr.bf16.mxu0 0
          %795 = vmatpush1.bf16.msra.mxu0 0
          %796 = vmatprep.subr.bf16.mxu0 0
          %797 = vmatpush1.bf16.msra.mxu0 0
          %798 = vmatprep.subr.bf16.mxu0 0
          %799 = vmatpush1.bf16.msra.mxu0 0
          %800 = vmatprep.subr.bf16.mxu0 0
          %801 = vmatpush1.bf16.msra.mxu0 0
          %802 = vmatprep.subr.bf16.mxu0 0
          %803 = vmatpush1.bf16.msra.mxu0 0
          %804 = vmatprep.subr.bf16.mxu0 0
          %805 = vmatpush1.bf16.msra.mxu0 0
          %806 = vmatprep.mubr.bf16.mxu0 0
          %807 = vmatmul.mubr.bf16.gmra.mrb[0].mxu0 %v702
          %v808 = vpop.f32.mrb[0].mxu0
          %v809 = vadd.f32 %v724, %v808
          %v810 = vpop.f32.mrb[0].mxu0
          %v811 = vpop.f32.mrb[0].mxu0
          %v812 = vadd.f32 %v724, %v811
          %v813 = vpop.f32.mrb[0].mxu0
          %814 = vdwg.mxu0
          %v815 = vmax.f32 %v809, 0.0
          %v816 = vmax.f32 %v812, 0.0
          %v817 = vpack.c.bf16 %v816, %v815
          %v818 = vld [vmem:[#allocation9] sm:$0xf]
          %v819 = vld [vmem:[#allocation9 + $0x4] sm:$0xf]
          %v820 = vld [vmem:[#allocation9 + $0x8] sm:$0xf]
          %v821 = vld [vmem:[#allocation9 + $0xc] sm:$0xf]
          %v822 = vld [vmem:[#allocation9 + $0x10] sm:$0xf]
          %v823 = vld [vmem:[#allocation9 + $0x14] sm:$0xf]
          %v824 = vld [vmem:[#allocation9 + $0x18] sm:$0xf]
          %v825 = vld [vmem:[#allocation9 + $0x1c] sm:$0xf]
          %v826 = vld [vmem:[#allocation9 + $0x20] sm:$0xf]
          %v827 = vld [vmem:[#allocation9 + $0x24] sm:$0xf]
          %v828 = vld [vmem:[#allocation9 + $0x28] sm:$0xf]
          %v829 = vld [vmem:[#allocation9 + $0x2c] sm:$0xf]
          %v830 = vld [vmem:[#allocation9 + $0x30] sm:$0xf]
          %v831 = vld [vmem:[#allocation9 + $0x34] sm:$0xf]
          %v832 = vld [vmem:[#allocation9 + $0x38] sm:$0xf]
          %v833 = vld [vmem:[#allocation9 + $0x3c] sm:$0xf]
          %v834 = vld [vmem:[%s6] sm:$0x1]
          %v836 = vlaneseq
          %v837 = vshrl.u32 %v836, 7
          %v838 = vsub.s32 0, %v837
          %v839 = vrot.slane %v834, %v838
          %v857 = vunpack.c.l.b16 %v818
          %v858 = vunpack.c.l.b16 %v819
          %v859 = vunpack.c.l.b16 %v820
          %v860 = vunpack.c.l.b16 %v821
          %v861 = vunpack.c.l.b16 %v822
          %v862 = vunpack.c.l.b16 %v823
          %v863 = vunpack.c.l.b16 %v824
          %v864 = vunpack.c.l.b16 %v825
          %v865 = vunpack.c.l.b16 %v826
          %v866 = vunpack.c.l.b16 %v827
          %v867 = vunpack.c.l.b16 %v828
          %v868 = vunpack.c.l.b16 %v829
          %v869 = vunpack.c.l.b16 %v830
          %v870 = vunpack.c.l.b16 %v831
          %v871 = vunpack.c.l.b16 %v832
          %v872 = vunpack.c.l.b16 %v833
          %v873 = vpack.c.b16 %v858, %v857
          %v874 = vpack.c.b16 %v860, %v859
          %v875 = vpack.c.b16 %v862, %v861
          %v876 = vpack.c.b16 %v864, %v863
          %v877 = vpack.c.b16 %v866, %v865
          %v878 = vpack.c.b16 %v868, %v867
          %v879 = vpack.c.b16 %v870, %v869
          %v880 = vpack.c.b16 %v872, %v871
          %889 = vmatprep.subr.bf16.mxu0 0
          %890 = vmatpush1.bf16.msra.mxu0 %v873
          %891 = vmatprep.subr.bf16.mxu0 0
          %892 = vmatpush1.bf16.msra.mxu0 %v874
          %893 = vmatprep.subr.bf16.mxu0 0
          %894 = vmatpush1.bf16.msra.mxu0 %v875
          %895 = vmatprep.subr.bf16.mxu0 0
          %896 = vmatpush1.bf16.msra.mxu0 %v876
          %897 = vmatprep.subr.bf16.mxu0 0
          %898 = vmatpush1.bf16.msra.mxu0 %v877
          %899 = vmatprep.subr.bf16.mxu0 0
          %900 = vmatpush1.bf16.msra.mxu0 %v878
          %901 = vmatprep.subr.bf16.mxu0 0
          %902 = vmatpush1.bf16.msra.mxu0 %v879
          %903 = vmatprep.subr.bf16.mxu0 0
          %904 = vmatpush1.bf16.msra.mxu0 %v880
          %905 = vmatprep.subr.bf16.mxu0 0
          %906 = vmatpush1.bf16.msra.mxu0 0
          %907 = vmatprep.subr.bf16.mxu0 0
          %908 = vmatpush1.bf16.msra.mxu0 0
          %909 = vmatprep.subr.bf16.mxu0 0
          %910 = vmatpush1.bf16.msra.mxu0 0
          %911 = vmatprep.subr.bf16.mxu0 0
          %912 = vmatpush1.bf16.msra.mxu0 0
          %913 = vmatprep.subr.bf16.mxu0 0
          %914 = vmatpush1.bf16.msra.mxu0 0
          %915 = vmatprep.subr.bf16.mxu0 0
          %916 = vmatpush1.bf16.msra.mxu0 0
          %917 = vmatprep.subr.bf16.mxu0 0
          %918 = vmatpush1.bf16.msra.mxu0 0
          %919 = vmatprep.subr.bf16.mxu0 0
          %920 = vmatpush1.bf16.msra.mxu0 0
          %921 = vmatprep.mubr.bf16.mxu0 0
          %922 = vmatmul.mubr.bf16.gmra.mrb[0].mxu0 %v817
          %v923 = vpop.f32.mrb[0].mxu0
          %v924 = vadd.f32 %v839, %v923
          %v925 = vpop.f32.mrb[0].mxu0
          %v926 = vpop.f32.mrb[0].mxu0
          %v927 = vadd.f32 %v839, %v926
          %v928 = vpop.f32.mrb[0].mxu0
          %929 = vdwg.mxu0
          %v930 = vmul.f32 %v924, %v924
          %v931 = vmul.f32 %v927, %v927
          %932 = vadd.xlane.f32.xlu0 %v930
          %v933 = vpop.xlane.xlu0 %932
          %934 = vadd.xlane.f32.xlu0 %v931
          %v935 = vpop.xlane.xlu0 %934
          %v936 = vmax.f32 %v933, 1e-24
          %v937 = vmax.f32 %v935, 1e-24
          %v938 = vrsqrt.pop %v936
          %v939 = vrsqrt.pop %v937
          %v940 = vmul.f32 %v924, %v938
          %v941 = vmul.f32 %v927, %v939
          %942 = vst [vmem:[#allocation11] sm:$0xff] %v940
          %943 = vst [vmem:[#allocation11 + $0x8] sm:$0xff] %v941
        $region72: #{tpu_custom_call.1} parent=47 // pred_fallthru
          _
        // Predicated region
        $region73: #{tpu_custom_call.1} parent=47 // pred_check
          %p944 = pneg %p215
        $region74: #{tpu_custom_call.1} parent=47 // pred_check_branch
          %946 = sbr.rel (%p944) target = $region76
        $region75: #{tpu_custom_call.1} parent=47 // pred_region
          %s947 = smul.u32 2, %s30
          %s949 = ssub.s32 256, 256
          %950 = vsyncadd [#allocation5], %s949
          %s951 = smul.addr %s947, 128
          %s952 = scalar_lea.hbm %s7, %s951
          %s953 = sshll.u32 [#allocation11], 4
          %s954 = int_to_ptr.vmem [resolvable:$true] %s953
          %959 = dma.vmem_to_hbm [thread:$0]  %s954, 256, %s952, [#allocation5], 128, 128, 8
        $region76: #{tpu_custom_call.1} parent=47 // pred_fallthru
          _
        // Predicated region
        $region77: #{tpu_custom_call.1} parent=47 // pred_check
          %p960 = pneg %p215
        $region78: #{tpu_custom_call.1} parent=47 // pred_check_branch
          %962 = sbr.rel (%p960) target = $region80
        $region79: #{tpu_custom_call.1} parent=47 // pred_region
          %963 = dma.done [#allocation5], 256
        $region80: #{tpu_custom_call.1} parent=47 // pred_fallthru
          _
      $region48: #{tpu_custom_call.1} parent=5 // pred_fallthru
        _
      %p964 = scmp.le.s32.totalorder 2, %s21
      // Predicated region
      $region81: #{tpu_custom_call.1} parent=5 // pred_check
        %p965 = pneg %p964
      $region82: #{tpu_custom_call.1} parent=5 // pred_check_branch
        %967 = sbr.rel (%p965) target = $region84
      $region83: #{tpu_custom_call.1} parent=5 // pred_region
        %s968 = ssub.s32 %s21, 2
      $region84: #{tpu_custom_call.1} parent=5 // pred_fallthru
        _
    $region6: #{tpu_custom_call.1} parent=1 // loop_footer
      %s25 = sadd.s32 1, %s21
    $region7: #{tpu_custom_call.1} parent=1 // loop_footer_branch
      %20 = sbr.rel target = $region3
    $region8: #{tpu_custom_call.1} parent=1 // loop_exit
      _
    %969 = vsyncpa [#allocation4], 1
    %s970 = scalar_lea.sflag [#allocation4], 1
    %971 = vsyncpa %s970, 1
    %972 = vsyncpa [#allocation7], 1
    %s973 = scalar_lea.sflag [#allocation7], 1
    %974 = vsyncpa %s973, 1
    %975 = vsyncpa [#allocation10], 1
    %976 = vsyncpa [#allocation5], 1
    %s977 = scalar_lea.sflag [#allocation5], 1
    %978 = vsyncpa %s977, 1

</llo_original>
